<compile_context>
chip_gen: v7x
topology: tpu7x:2x2x1
jax: 0.10.0
libtpu: 0.0.40
codegen_flags: <defaults>
</compile_context>

<pallas_src>
import functools
import math

import jax
import jax.numpy as jnp
from jax import lax
from jax.experimental import pallas as pl
from jax.experimental.pallas import tpu as pltpu


# ----------------------------- hyper-params ---------------------------------
N_EMBD = 32
N_HEAD = 4
LN_EPS = 1e-5

# Matmul-input dtype.  float32 keeps exact parity with the f32 reference.
# On v6e/v7x set this to jnp.bfloat16 to feed the MXU at native width
# (accumulation stays f32 via preferred_element_type; LayerNorm / softmax /
# GELU statistics remain f32, which is also what v5e's VPU/EUP require).
MATMUL_DTYPE = jnp.float32


# ------------------------------ fused kernel --------------------------------
def _decoder_block_kernel(x_ref, ma_g_ref, ma_b_ref,
                          wqkv_ref, bqkv_ref, wo_ref, bo_ref,
                          mlp_g_ref, mlp_b_ref,
                          w1_ref, b1_ref, lnh_g_ref, lnh_b_ref,
                          w2_ref, b2_ref, o_ref, *, n_head, eps):
    x = x_ref[...].astype(jnp.float32)                       # (T, C)
    T, C = x.shape
    D = C // n_head
    scale = 1.0 / math.sqrt(D)

    def ln(v, g_ref, b_ref):
        mu = jnp.mean(v, axis=-1, keepdims=True)
        var = jnp.mean((v - mu) ** 2, axis=-1, keepdims=True)
        return (v - mu) * lax.rsqrt(var + eps) * g_ref[...] + b_ref[...]

    def matmul(a, w_ref, b_ref):
        return jnp.dot(a.astype(MATMUL_DTYPE),
                       w_ref[...].astype(MATMUL_DTYPE),
                       preferred_element_type=jnp.float32) + b_ref[...]

    # ---- masked self-attention sub-block (dropouts = identity) ----
    h = ln(x, ma_g_ref, ma_b_ref)
    qkv = matmul(h, wqkv_ref, bqkv_ref)                      # (T, 3C)
    q, k, v = jnp.split(qkv, 3, axis=-1)                     # (T, C) each

    # Causal mask built once per kernel invocation, shared by all heads.
    rows = lax.broadcasted_iota(jnp.int32, (T, T), 0)
    cols = lax.broadcasted_iota(jnp.int32, (T, T), 1)
    causal = cols <= rows

    head_outs = []
    for hd in range(n_head):                                 # static unroll (H=4)
        sl = slice(hd * D, (hd + 1) * D)
        qh, kh, vh = q[:, sl], k[:, sl], v[:, sl]            # (T, D)
        # q @ k^T without materializing a transpose: contract the last axes.
        s = lax.dot_general(qh, kh, (((1,), (1,)), ((), ())),
                            preferred_element_type=jnp.float32) * scale
        s = jnp.where(causal, s, -jnp.inf)
        m = jnp.max(s, axis=-1, keepdims=True)
        p = jnp.exp(s - m)
        denom = jnp.sum(p, axis=-1, keepdims=True)
        p = p * pl.reciprocal(denom, approx=True)            # EUP slot, not a divide
        head_outs.append(jnp.dot(p, vh, preferred_element_type=jnp.float32))
    y = jnp.concatenate(head_outs, axis=-1)                  # (T, C)

    y = matmul(y, wo_ref, bo_ref)                            # output projection
    x = x + y                                                # residual (stays in VMEM)

    # ---- MLP sub-block: Linear -> LayerNorm -> GELU -> (Dropout) -> Linear ----
    h = ln(x, mlp_g_ref, mlp_b_ref)
    h = matmul(h, w1_ref, b1_ref)                            # (T, 4C)
    h = ln(h, lnh_g_ref, lnh_b_ref)
    h = 0.5 * h * (1.0 + lax.erf(h * jnp.float32(0.7071067811865476)))  # exact GELU
    h = matmul(h, w2_ref, b2_ref)                            # (T, C)

    o_ref[...] = (x + h).astype(o_ref.dtype)                 # second residual


def decoder_block(x, p):
    B, T, C = x.shape
    kernel = functools.partial(_decoder_block_kernel, n_head=N_HEAD, eps=LN_EPS)
    row = lambda v: v.reshape(1, -1)
    const = lambda shape: pl.BlockSpec(shape, lambda i: (0, 0))
    return pl.pallas_call(
        kernel,
        out_shape=jax.ShapeDtypeStruct((B, T, C), x.dtype),
        grid=(B,),
        in_specs=[
            pl.BlockSpec((None, T, C), lambda i: (i, 0, 0)),     # x: one batch row
            const((1, C)), const((1, C)),                        # ma_ln gamma/beta
            const((C, 3 * C)), const((1, 3 * C)),                # Wqkv, bqkv
            const((C, C)), const((1, C)),                        # Wo, bo
            const((1, C)), const((1, C)),                        # mlp_ln gamma/beta
            const((C, 4 * C)), const((1, 4 * C)),                # W1, b1
            const((1, 4 * C)), const((1, 4 * C)),                # ln_h gamma/beta
            const((4 * C, C)), const((1, C)),                    # W2, b2
        ],
        out_specs=pl.BlockSpec((None, T, C), lambda i: (i, 0, 0)),
        compiler_params=pltpu.CompilerParams(
            dimension_semantics=("parallel",)),                  # v7x: 2 TCs split B
    )(x,
      row(p["ma_ln_g"]), row(p["ma_ln_b"]),
      p["Wqkv"], row(p["bqkv"]),
      p["Wo"], row(p["bo"]),
      row(p["mlp_ln_g"]), row(p["mlp_ln_b"]),
      p["W1"], row(p["b1"]),
      row(p["ln_h_g"]), row(p["ln_h_b"]),
      p["W2"], row(p["b2"]))


# ------------------------------ parameter init -------------------------------
def init_params(key):
    ks = iter(jax.random.split(key, 20))
    n = lambda shape, s=0.02: (s * jax.random.normal(next(ks), shape)).astype(jnp.float32)
    C = N_EMBD
    return dict(
        ma_ln_g=1.0 + n((C,), 0.1), ma_ln_b=n((C,), 0.1),
        Wqkv=n((C, 3 * C)), bqkv=n((3 * C,)),
        Wo=n((C, C)), bo=n((C,)),
        mlp_ln_g=1.0 + n((C,), 0.1), mlp_ln_b=n((C,), 0.1),
        W1=n((C, 4 * C)), b1=n((4 * C,)),
        ln_h_g=1.0 + n((4 * C,), 0.1), ln_h_b=n((4 * C,), 0.1),
        W2=n((4 * C, C)), b2=n((C,)),
    )


# --------------------------- pure-JAX reference ------------------------------
def decoder_block_ref(x, p):
    B, T, C = x.shape
    D = C // N_HEAD

    def ln(v, g, b):
        mu = v.mean(-1, keepdims=True)
        var = ((v - mu) ** 2).mean(-1, keepdims=True)
        return (v - mu) / jnp.sqrt(var + LN_EPS) * g + b

    h = ln(x, p["ma_ln_g"], p["ma_ln_b"])
    qkv = h @ p["Wqkv"] + p["bqkv"]
    q, k, v = jnp.split(qkv, 3, axis=-1)
    heads = lambda t: t.reshape(B, T, N_HEAD, D).transpose(0, 2, 1, 3)
    q, k, v = heads(q), heads(k), heads(v)
    s = (q @ k.transpose(0, 1, 3, 2)) / math.sqrt(D)
    mask = jnp.tril(jnp.ones((T, T), bool))
    s = jnp.where(mask, s, -jnp.inf)
    attn = jax.nn.softmax(s, axis=-1)
    y = (attn @ v).transpose(0, 2, 1, 3).reshape(B, T, C)
    y = y @ p["Wo"] + p["bo"]
    x = x + y
    h = ln(x, p["mlp_ln_g"], p["mlp_ln_b"])
    h = h @ p["W1"] + p["b1"]
    h = ln(h, p["ln_h_g"], p["ln_h_b"])
    h = 0.5 * h * (1.0 + lax.erf(h / math.sqrt(2.0)))
    h = h @ p["W2"] + p["b2"]
    return x + h


# ---------------------------------- main -------------------------------------
if __name__ == "__main__":
    key = jax.random.PRNGKey(0)
    kx, kp = jax.random.split(key)
    params = init_params(kp)

    B, T = 2, 8
    x = jax.random.normal(kx, (B, T, N_EMBD), jnp.float32)

    out = decoder_block(x, params)
    out = jax.block_until_ready(out)

    ref = decoder_block_ref(x, params)
    assert out.shape == (B, T, N_EMBD)
    assert bool(jnp.all(jnp.isfinite(out)))
    assert float(jnp.max(jnp.abs(out - ref))) < 1e-2
    print("KERNEL_OK")
</pallas_src>

<mosaic_0001>
module attributes {stable_mosaic.version = 11 : i64} {
  func.func @_decoder_block_kernel(%arg0: i32, %arg1: memref<1x8x32xf32, #tpu.memory_space<vmem>>, %arg2: memref<1x32xf32, #tpu.memory_space<vmem>>, %arg3: memref<1x32xf32, #tpu.memory_space<vmem>>, %arg4: memref<32x96xf32, #tpu.memory_space<vmem>>, %arg5: memref<1x96xf32, #tpu.memory_space<vmem>>, %arg6: memref<32x32xf32, #tpu.memory_space<vmem>>, %arg7: memref<1x32xf32, #tpu.memory_space<vmem>>, %arg8: memref<1x32xf32, #tpu.memory_space<vmem>>, %arg9: memref<1x32xf32, #tpu.memory_space<vmem>>, %arg10: memref<32x128xf32, #tpu.memory_space<vmem>>, %arg11: memref<1x128xf32, #tpu.memory_space<vmem>>, %arg12: memref<1x128xf32, #tpu.memory_space<vmem>>, %arg13: memref<1x128xf32, #tpu.memory_space<vmem>>, %arg14: memref<128x32xf32, #tpu.memory_space<vmem>>, %arg15: memref<1x32xf32, #tpu.memory_space<vmem>>, %arg16: memref<1x8x32xf32, #tpu.memory_space<vmem>>) attributes {dimension_semantics = [#tpu.dimension_semantics<parallel>], iteration_bounds = array<i64: 2>, scalar_prefetch = 0 : i64, scratch_operands = 0 : i64, tpu.core_type = #tpu.core_type<tc>, window_params = [{transform_indices = @transform_0, window_bounds = array<i64: 1, 8, 32>}, {pipeline_mode = #tpu.pipeline_mode<synchronous>, transform_indices = @transform_1, window_bounds = array<i64: 1, 32>}, {pipeline_mode = #tpu.pipeline_mode<synchronous>, transform_indices = @transform_2, window_bounds = array<i64: 1, 32>}, {pipeline_mode = #tpu.pipeline_mode<synchronous>, transform_indices = @transform_3, window_bounds = array<i64: 32, 96>}, {pipeline_mode = #tpu.pipeline_mode<synchronous>, transform_indices = @transform_4, window_bounds = array<i64: 1, 96>}, {pipeline_mode = #tpu.pipeline_mode<synchronous>, transform_indices = @transform_5, window_bounds = array<i64: 32, 32>}, {pipeline_mode = #tpu.pipeline_mode<synchronous>, transform_indices = @transform_6, window_bounds = array<i64: 1, 32>}, {pipeline_mode = #tpu.pipeline_mode<synchronous>, transform_indices = @transform_7, window_bounds = array<i64: 1, 32>}, {pipeline_mode = #tpu.pipeline_mode<synchronous>, transform_indices = @transform_8, window_bounds = array<i64: 1, 32>}, {pipeline_mode = #tpu.pipeline_mode<synchronous>, transform_indices = @transform_9, window_bounds = array<i64: 32, 128>}, {pipeline_mode = #tpu.pipeline_mode<synchronous>, transform_indices = @transform_10, window_bounds = array<i64: 1, 128>}, {pipeline_mode = #tpu.pipeline_mode<synchronous>, transform_indices = @transform_11, window_bounds = array<i64: 1, 128>}, {pipeline_mode = #tpu.pipeline_mode<synchronous>, transform_indices = @transform_12, window_bounds = array<i64: 1, 128>}, {pipeline_mode = #tpu.pipeline_mode<synchronous>, transform_indices = @transform_13, window_bounds = array<i64: 128, 32>}, {pipeline_mode = #tpu.pipeline_mode<synchronous>, transform_indices = @transform_14, window_bounds = array<i64: 1, 32>}, {transform_indices = @transform_15, window_bounds = array<i64: 1, 8, 32>}]} {
    %c0 = arith.constant 0 : index
    %c0_0 = arith.constant 0 : index
    %c0_1 = arith.constant 0 : index
    %0 = vector.load %arg1[%c0, %c0_0, %c0_1] : memref<1x8x32xf32, #tpu.memory_space<vmem>>, vector<1x8x32xf32>
    %1 = vector.shape_cast %0 : vector<1x8x32xf32> to vector<8x32xf32>
    %cst = arith.constant dense<0.000000e+00> : vector<8xf32>
    %2 = vector.multi_reduction <add>, %1, %cst [1] : vector<8x32xf32> to vector<8xf32>
    %3 = vector.shape_cast %2 : vector<8xf32> to vector<8x1xf32>
    %cst_2 = arith.constant 3.200000e+01 : f32
    %4 = vector.broadcast %cst_2 : f32 to vector<8x1xf32>
    %5 = arith.divf %3, %4 : vector<8x1xf32>
    %6 = vector.broadcast %5 : vector<8x1xf32> to vector<8x32xf32>
    %7 = arith.subf %1, %6 : vector<8x32xf32>
    %8 = arith.mulf %7, %7 : vector<8x32xf32>
    %cst_3 = arith.constant dense<0.000000e+00> : vector<8xf32>
    %9 = vector.multi_reduction <add>, %8, %cst_3 [1] : vector<8x32xf32> to vector<8xf32>
    %10 = vector.shape_cast %9 : vector<8xf32> to vector<8x1xf32>
    %cst_4 = arith.constant 3.200000e+01 : f32
    %11 = vector.broadcast %cst_4 : f32 to vector<8x1xf32>
    %12 = arith.divf %10, %11 : vector<8x1xf32>
    %13 = vector.broadcast %5 : vector<8x1xf32> to vector<8x32xf32>
    %14 = arith.subf %1, %13 : vector<8x32xf32>
    %cst_5 = arith.constant 9.99999974E-6 : f32
    %15 = vector.broadcast %cst_5 : f32 to vector<8x1xf32>
    %16 = arith.addf %12, %15 : vector<8x1xf32>
    %17 = math.rsqrt %16 : vector<8x1xf32>
    %18 = vector.broadcast %17 : vector<8x1xf32> to vector<8x32xf32>
    %19 = arith.mulf %14, %18 : vector<8x32xf32>
    %c0_6 = arith.constant 0 : index
    %c0_7 = arith.constant 0 : index
    %20 = vector.load %arg2[%c0_6, %c0_7] : memref<1x32xf32, #tpu.memory_space<vmem>>, vector<1x32xf32>
    %21 = vector.broadcast %20 : vector<1x32xf32> to vector<8x32xf32>
    %22 = arith.mulf %19, %21 : vector<8x32xf32>
    %c0_8 = arith.constant 0 : index
    %c0_9 = arith.constant 0 : index
    %23 = vector.load %arg3[%c0_8, %c0_9] : memref<1x32xf32, #tpu.memory_space<vmem>>, vector<1x32xf32>
    %24 = vector.broadcast %23 : vector<1x32xf32> to vector<8x32xf32>
    %25 = arith.addf %22, %24 : vector<8x32xf32>
    %c0_10 = arith.constant 0 : index
    %c0_11 = arith.constant 0 : index
    %26 = vector.load %arg4[%c0_10, %c0_11] : memref<32x96xf32, #tpu.memory_space<vmem>>, vector<32x96xf32>
    %cst_12 = arith.constant dense<0.000000e+00> : vector<8x96xf32>
    %27 = tpu.matmul %25, %26, %cst_12 {dimension_numbers = #tpu.dot_dimension_numbers<[1], [0], [0], [1], [0, 0, 1, 1], [], []>} : vector<8x32xf32>, vector<32x96xf32>, vector<8x96xf32> -> vector<8x96xf32>
    %c0_13 = arith.constant 0 : index
    %c0_14 = arith.constant 0 : index
    %28 = vector.load %arg5[%c0_13, %c0_14] : memref<1x96xf32, #tpu.memory_space<vmem>>, vector<1x96xf32>
    %29 = vector.broadcast %28 : vector<1x96xf32> to vector<8x96xf32>
    %30 = arith.addf %27, %29 : vector<8x96xf32>
    %31 = vector.extract_strided_slice %30 {offsets = [0, 0], sizes = [8, 32], strides = [1, 1]} : vector<8x96xf32> to vector<8x32xf32>
    %32 = vector.extract_strided_slice %30 {offsets = [0, 32], sizes = [8, 32], strides = [1, 1]} : vector<8x96xf32> to vector<8x32xf32>
    %33 = vector.extract_strided_slice %30 {offsets = [0, 64], sizes = [8, 32], strides = [1, 1]} : vector<8x96xf32> to vector<8x32xf32>
    %34 = tpu.iota {dimensions = array<i32: 0>} : vector<8x8xi32>
    %35 = tpu.iota {dimensions = array<i32: 1>} : vector<8x8xi32>
    %36 = arith.cmpi sle, %35, %34 : vector<8x8xi32>
    %37 = vector.extract_strided_slice %31 {offsets = [0, 0], sizes = [8, 8], strides = [1, 1]} : vector<8x32xf32> to vector<8x8xf32>
    %38 = vector.extract_strided_slice %32 {offsets = [0, 0], sizes = [8, 8], strides = [1, 1]} : vector<8x32xf32> to vector<8x8xf32>
    %39 = vector.extract_strided_slice %33 {offsets = [0, 0], sizes = [8, 8], strides = [1, 1]} : vector<8x32xf32> to vector<8x8xf32>
    %cst_15 = arith.constant dense<0.000000e+00> : vector<8x8xf32>
    %40 = tpu.matmul %37, %38, %cst_15 {dimension_numbers = #tpu.dot_dimension_numbers<[1], [1], [0], [0], [0, 0, 1, 0], [], []>} : vector<8x8xf32>, vector<8x8xf32>, vector<8x8xf32> -> vector<8x8xf32>
    %cst_16 = arith.constant 0.353553385 : f32
    %41 = vector.broadcast %cst_16 : f32 to vector<8x8xf32>
    %42 = arith.mulf %40, %41 : vector<8x8xf32>
    %cst_17 = arith.constant 0xFF800000 : f32
    %43 = vector.broadcast %cst_17 : f32 to vector<8x8xf32>
    %44 = arith.select %36, %42, %43 : vector<8x8xi1>, vector<8x8xf32>
    %cst_18 = arith.constant dense<0xFF800000> : vector<8xf32>
    %45 = vector.multi_reduction <maximumf>, %44, %cst_18 [1] : vector<8x8xf32> to vector<8xf32>
    %46 = vector.shape_cast %45 : vector<8xf32> to vector<8x1xf32>
    %47 = vector.broadcast %46 : vector<8x1xf32> to vector<8x8xf32>
    %48 = arith.subf %44, %47 : vector<8x8xf32>
    %49 = math.exp %48 : vector<8x8xf32>
    %cst_19 = arith.constant dense<0.000000e+00> : vector<8xf32>
    %50 = vector.multi_reduction <add>, %49, %cst_19 [1] : vector<8x8xf32> to vector<8xf32>
    %51 = vector.shape_cast %50 : vector<8xf32> to vector<8x1xf32>
    %52 = tpu.reciprocal %51 {approx = true} : vector<8x1xf32> -> vector<8x1xf32>
    %53 = vector.broadcast %52 : vector<8x1xf32> to vector<8x8xf32>
    %54 = arith.mulf %49, %53 : vector<8x8xf32>
    %cst_20 = arith.constant dense<0.000000e+00> : vector<8x8xf32>
    %55 = tpu.matmul %54, %39, %cst_20 {dimension_numbers = #tpu.dot_dimension_numbers<[1], [0], [0], [1], [0, 0, 1, 1], [], []>} : vector<8x8xf32>, vector<8x8xf32>, vector<8x8xf32> -> vector<8x8xf32>
    %56 = vector.extract_strided_slice %31 {offsets = [0, 8], sizes = [8, 8], strides = [1, 1]} : vector<8x32xf32> to vector<8x8xf32>
    %57 = vector.extract_strided_slice %32 {offsets = [0, 8], sizes = [8, 8], strides = [1, 1]} : vector<8x32xf32> to vector<8x8xf32>
    %58 = vector.extract_strided_slice %33 {offsets = [0, 8], sizes = [8, 8], strides = [1, 1]} : vector<8x32xf32> to vector<8x8xf32>
    %cst_21 = arith.constant dense<0.000000e+00> : vector<8x8xf32>
    %59 = tpu.matmul %56, %57, %cst_21 {dimension_numbers = #tpu.dot_dimension_numbers<[1], [1], [0], [0], [0, 0, 1, 0], [], []>} : vector<8x8xf32>, vector<8x8xf32>, vector<8x8xf32> -> vector<8x8xf32>
    %cst_22 = arith.constant 0.353553385 : f32
    %60 = vector.broadcast %cst_22 : f32 to vector<8x8xf32>
    %61 = arith.mulf %59, %60 : vector<8x8xf32>
    %cst_23 = arith.constant 0xFF800000 : f32
    %62 = vector.broadcast %cst_23 : f32 to vector<8x8xf32>
    %63 = arith.select %36, %61, %62 : vector<8x8xi1>, vector<8x8xf32>
    %cst_24 = arith.constant dense<0xFF800000> : vector<8xf32>
    %64 = vector.multi_reduction <maximumf>, %63, %cst_24 [1] : vector<8x8xf32> to vector<8xf32>
    %65 = vector.shape_cast %64 : vector<8xf32> to vector<8x1xf32>
    %66 = vector.broadcast %65 : vector<8x1xf32> to vector<8x8xf32>
    %67 = arith.subf %63, %66 : vector<8x8xf32>
    %68 = math.exp %67 : vector<8x8xf32>
    %cst_25 = arith.constant dense<0.000000e+00> : vector<8xf32>
    %69 = vector.multi_reduction <add>, %68, %cst_25 [1] : vector<8x8xf32> to vector<8xf32>
    %70 = vector.shape_cast %69 : vector<8xf32> to vector<8x1xf32>
    %71 = tpu.reciprocal %70 {approx = true} : vector<8x1xf32> -> vector<8x1xf32>
    %72 = vector.broadcast %71 : vector<8x1xf32> to vector<8x8xf32>
    %73 = arith.mulf %68, %72 : vector<8x8xf32>
    %cst_26 = arith.constant dense<0.000000e+00> : vector<8x8xf32>
    %74 = tpu.matmul %73, %58, %cst_26 {dimension_numbers = #tpu.dot_dimension_numbers<[1], [0], [0], [1], [0, 0, 1, 1], [], []>} : vector<8x8xf32>, vector<8x8xf32>, vector<8x8xf32> -> vector<8x8xf32>
    %75 = vector.extract_strided_slice %31 {offsets = [0, 16], sizes = [8, 8], strides = [1, 1]} : vector<8x32xf32> to vector<8x8xf32>
    %76 = vector.extract_strided_slice %32 {offsets = [0, 16], sizes = [8, 8], strides = [1, 1]} : vector<8x32xf32> to vector<8x8xf32>
    %77 = vector.extract_strided_slice %33 {offsets = [0, 16], sizes = [8, 8], strides = [1, 1]} : vector<8x32xf32> to vector<8x8xf32>
    %cst_27 = arith.constant dense<0.000000e+00> : vector<8x8xf32>
    %78 = tpu.matmul %75, %76, %cst_27 {dimension_numbers = #tpu.dot_dimension_numbers<[1], [1], [0], [0], [0, 0, 1, 0], [], []>} : vector<8x8xf32>, vector<8x8xf32>, vector<8x8xf32> -> vector<8x8xf32>
    %cst_28 = arith.constant 0.353553385 : f32
    %79 = vector.broadcast %cst_28 : f32 to vector<8x8xf32>
    %80 = arith.mulf %78, %79 : vector<8x8xf32>
    %cst_29 = arith.constant 0xFF800000 : f32
    %81 = vector.broadcast %cst_29 : f32 to vector<8x8xf32>
    %82 = arith.select %36, %80, %81 : vector<8x8xi1>, vector<8x8xf32>
    %cst_30 = arith.constant dense<0xFF800000> : vector<8xf32>
    %83 = vector.multi_reduction <maximumf>, %82, %cst_30 [1] : vector<8x8xf32> to vector<8xf32>
    %84 = vector.shape_cast %83 : vector<8xf32> to vector<8x1xf32>
    %85 = vector.broadcast %84 : vector<8x1xf32> to vector<8x8xf32>
    %86 = arith.subf %82, %85 : vector<8x8xf32>
    %87 = math.exp %86 : vector<8x8xf32>
    %cst_31 = arith.constant dense<0.000000e+00> : vector<8xf32>
    %88 = vector.multi_reduction <add>, %87, %cst_31 [1] : vector<8x8xf32> to vector<8xf32>
    %89 = vector.shape_cast %88 : vector<8xf32> to vector<8x1xf32>
    %90 = tpu.reciprocal %89 {approx = true} : vector<8x1xf32> -> vector<8x1xf32>
    %91 = vector.broadcast %90 : vector<8x1xf32> to vector<8x8xf32>
    %92 = arith.mulf %87, %91 : vector<8x8xf32>
    %cst_32 = arith.constant dense<0.000000e+00> : vector<8x8xf32>
    %93 = tpu.matmul %92, %77, %cst_32 {dimension_numbers = #tpu.dot_dimension_numbers<[1], [0], [0], [1], [0, 0, 1, 1], [], []>} : vector<8x8xf32>, vector<8x8xf32>, vector<8x8xf32> -> vector<8x8xf32>
    %94 = vector.extract_strided_slice %31 {offsets = [0, 24], sizes = [8, 8], strides = [1, 1]} : vector<8x32xf32> to vector<8x8xf32>
    %95 = vector.extract_strided_slice %32 {offsets = [0, 24], sizes = [8, 8], strides = [1, 1]} : vector<8x32xf32> to vector<8x8xf32>
    %96 = vector.extract_strided_slice %33 {offsets = [0, 24], sizes = [8, 8], strides = [1, 1]} : vector<8x32xf32> to vector<8x8xf32>
    %cst_33 = arith.constant dense<0.000000e+00> : vector<8x8xf32>
    %97 = tpu.matmul %94, %95, %cst_33 {dimension_numbers = #tpu.dot_dimension_numbers<[1], [1], [0], [0], [0, 0, 1, 0], [], []>} : vector<8x8xf32>, vector<8x8xf32>, vector<8x8xf32> -> vector<8x8xf32>
    %cst_34 = arith.constant 0.353553385 : f32
    %98 = vector.broadcast %cst_34 : f32 to vector<8x8xf32>
    %99 = arith.mulf %97, %98 : vector<8x8xf32>
    %cst_35 = arith.constant 0xFF800000 : f32
    %100 = vector.broadcast %cst_35 : f32 to vector<8x8xf32>
    %101 = arith.select %36, %99, %100 : vector<8x8xi1>, vector<8x8xf32>
    %cst_36 = arith.constant dense<0xFF800000> : vector<8xf32>
    %102 = vector.multi_reduction <maximumf>, %101, %cst_36 [1] : vector<8x8xf32> to vector<8xf32>
    %103 = vector.shape_cast %102 : vector<8xf32> to vector<8x1xf32>
    %104 = vector.broadcast %103 : vector<8x1xf32> to vector<8x8xf32>
    %105 = arith.subf %101, %104 : vector<8x8xf32>
    %106 = math.exp %105 : vector<8x8xf32>
    %cst_37 = arith.constant dense<0.000000e+00> : vector<8xf32>
    %107 = vector.multi_reduction <add>, %106, %cst_37 [1] : vector<8x8xf32> to vector<8xf32>
    %108 = vector.shape_cast %107 : vector<8xf32> to vector<8x1xf32>
    %109 = tpu.reciprocal %108 {approx = true} : vector<8x1xf32> -> vector<8x1xf32>
    %110 = vector.broadcast %109 : vector<8x1xf32> to vector<8x8xf32>
    %111 = arith.mulf %106, %110 : vector<8x8xf32>
    %cst_38 = arith.constant dense<0.000000e+00> : vector<8x8xf32>
    %112 = tpu.matmul %111, %96, %cst_38 {dimension_numbers = #tpu.dot_dimension_numbers<[1], [0], [0], [1], [0, 0, 1, 1], [], []>} : vector<8x8xf32>, vector<8x8xf32>, vector<8x8xf32> -> vector<8x8xf32>
    %113 = tpu.concatenate %55, %74, %93, %112 in 1 : vector<8x8xf32>, vector<8x8xf32>, vector<8x8xf32>, vector<8x8xf32> -> vector<8x32xf32>
    %c0_39 = arith.constant 0 : index
    %c0_40 = arith.constant 0 : index
    %114 = vector.load %arg6[%c0_39, %c0_40] : memref<32x32xf32, #tpu.memory_space<vmem>>, vector<32x32xf32>
    %cst_41 = arith.constant dense<0.000000e+00> : vector<8x32xf32>
    %115 = tpu.matmul %113, %114, %cst_41 {dimension_numbers = #tpu.dot_dimension_numbers<[1], [0], [0], [1], [0, 0, 1, 1], [], []>} : vector<8x32xf32>, vector<32x32xf32>, vector<8x32xf32> -> vector<8x32xf32>
    %c0_42 = arith.constant 0 : index
    %c0_43 = arith.constant 0 : index
    %116 = vector.load %arg7[%c0_42, %c0_43] : memref<1x32xf32, #tpu.memory_space<vmem>>, vector<1x32xf32>
    %117 = vector.broadcast %116 : vector<1x32xf32> to vector<8x32xf32>
    %118 = arith.addf %115, %117 : vector<8x32xf32>
    %119 = arith.addf %1, %118 : vector<8x32xf32>
    %cst_44 = arith.constant dense<0.000000e+00> : vector<8xf32>
    %120 = vector.multi_reduction <add>, %119, %cst_44 [1] : vector<8x32xf32> to vector<8xf32>
    %121 = vector.shape_cast %120 : vector<8xf32> to vector<8x1xf32>
    %cst_45 = arith.constant 3.200000e+01 : f32
    %122 = vector.broadcast %cst_45 : f32 to vector<8x1xf32>
    %123 = arith.divf %121, %122 : vector<8x1xf32>
    %124 = vector.broadcast %123 : vector<8x1xf32> to vector<8x32xf32>
    %125 = arith.subf %119, %124 : vector<8x32xf32>
    %126 = arith.mulf %125, %125 : vector<8x32xf32>
    %cst_46 = arith.constant dense<0.000000e+00> : vector<8xf32>
    %127 = vector.multi_reduction <add>, %126, %cst_46 [1] : vector<8x32xf32> to vector<8xf32>
    %128 = vector.shape_cast %127 : vector<8xf32> to vector<8x1xf32>
    %cst_47 = arith.constant 3.200000e+01 : f32
    %129 = vector.broadcast %cst_47 : f32 to vector<8x1xf32>
    %130 = arith.divf %128, %129 : vector<8x1xf32>
    %131 = vector.broadcast %123 : vector<8x1xf32> to vector<8x32xf32>
    %132 = arith.subf %119, %131 : vector<8x32xf32>
    %cst_48 = arith.constant 9.99999974E-6 : f32
    %133 = vector.broadcast %cst_48 : f32 to vector<8x1xf32>
    %134 = arith.addf %130, %133 : vector<8x1xf32>
    %135 = math.rsqrt %134 : vector<8x1xf32>
    %136 = vector.broadcast %135 : vector<8x1xf32> to vector<8x32xf32>
    %137 = arith.mulf %132, %136 : vector<8x32xf32>
    %c0_49 = arith.constant 0 : index
    %c0_50 = arith.constant 0 : index
    %138 = vector.load %arg8[%c0_49, %c0_50] : memref<1x32xf32, #tpu.memory_space<vmem>>, vector<1x32xf32>
    %139 = vector.broadcast %138 : vector<1x32xf32> to vector<8x32xf32>
    %140 = arith.mulf %137, %139 : vector<8x32xf32>
    %c0_51 = arith.constant 0 : index
    %c0_52 = arith.constant 0 : index
    %141 = vector.load %arg9[%c0_51, %c0_52] : memref<1x32xf32, #tpu.memory_space<vmem>>, vector<1x32xf32>
    %142 = vector.broadcast %141 : vector<1x32xf32> to vector<8x32xf32>
    %143 = arith.addf %140, %142 : vector<8x32xf32>
    %c0_53 = arith.constant 0 : index
    %c0_54 = arith.constant 0 : index
    %144 = vector.load %arg10[%c0_53, %c0_54] : memref<32x128xf32, #tpu.memory_space<vmem>>, vector<32x128xf32>
    %cst_55 = arith.constant dense<0.000000e+00> : vector<8x128xf32>
    %145 = tpu.matmul %143, %144, %cst_55 {dimension_numbers = #tpu.dot_dimension_numbers<[1], [0], [0], [1], [0, 0, 1, 1], [], []>} : vector<8x32xf32>, vector<32x128xf32>, vector<8x128xf32> -> vector<8x128xf32>
    %c0_56 = arith.constant 0 : index
    %c0_57 = arith.constant 0 : index
    %146 = vector.load %arg11[%c0_56, %c0_57] : memref<1x128xf32, #tpu.memory_space<vmem>>, vector<1x128xf32>
    %147 = vector.broadcast %146 : vector<1x128xf32> to vector<8x128xf32>
    %148 = arith.addf %145, %147 : vector<8x128xf32>
    %cst_58 = arith.constant dense<0.000000e+00> : vector<8xf32>
    %149 = vector.multi_reduction <add>, %148, %cst_58 [1] : vector<8x128xf32> to vector<8xf32>
    %150 = vector.shape_cast %149 : vector<8xf32> to vector<8x1xf32>
    %cst_59 = arith.constant 1.280000e+02 : f32
    %151 = vector.broadcast %cst_59 : f32 to vector<8x1xf32>
    %152 = arith.divf %150, %151 : vector<8x1xf32>
    %153 = vector.broadcast %152 : vector<8x1xf32> to vector<8x128xf32>
    %154 = arith.subf %148, %153 : vector<8x128xf32>
    %155 = arith.mulf %154, %154 : vector<8x128xf32>
    %cst_60 = arith.constant dense<0.000000e+00> : vector<8xf32>
    %156 = vector.multi_reduction <add>, %155, %cst_60 [1] : vector<8x128xf32> to vector<8xf32>
    %157 = vector.shape_cast %156 : vector<8xf32> to vector<8x1xf32>
    %cst_61 = arith.constant 1.280000e+02 : f32
    %158 = vector.broadcast %cst_61 : f32 to vector<8x1xf32>
    %159 = arith.divf %157, %158 : vector<8x1xf32>
    %160 = vector.broadcast %152 : vector<8x1xf32> to vector<8x128xf32>
    %161 = arith.subf %148, %160 : vector<8x128xf32>
    %cst_62 = arith.constant 9.99999974E-6 : f32
    %162 = vector.broadcast %cst_62 : f32 to vector<8x1xf32>
    %163 = arith.addf %159, %162 : vector<8x1xf32>
    %164 = math.rsqrt %163 : vector<8x1xf32>
    %165 = vector.broadcast %164 : vector<8x1xf32> to vector<8x128xf32>
    %166 = arith.mulf %161, %165 : vector<8x128xf32>
    %c0_63 = arith.constant 0 : index
    %c0_64 = arith.constant 0 : index
    %167 = vector.load %arg12[%c0_63, %c0_64] : memref<1x128xf32, #tpu.memory_space<vmem>>, vector<1x128xf32>
    %168 = vector.broadcast %167 : vector<1x128xf32> to vector<8x128xf32>
    %169 = arith.mulf %166, %168 : vector<8x128xf32>
    %c0_65 = arith.constant 0 : index
    %c0_66 = arith.constant 0 : index
    %170 = vector.load %arg13[%c0_65, %c0_66] : memref<1x128xf32, #tpu.memory_space<vmem>>, vector<1x128xf32>
    %171 = vector.broadcast %170 : vector<1x128xf32> to vector<8x128xf32>
    %172 = arith.addf %169, %171 : vector<8x128xf32>
    %cst_67 = arith.constant 5.000000e-01 : f32
    %173 = vector.broadcast %cst_67 : f32 to vector<8x128xf32>
    %174 = arith.mulf %173, %172 : vector<8x128xf32>
    %cst_68 = arith.constant 0.707106769 : f32
    %175 = vector.broadcast %cst_68 : f32 to vector<8x128xf32>
    %176 = arith.mulf %172, %175 : vector<8x128xf32>
    %177 = math.erf %176 : vector<8x128xf32>
    %cst_69 = arith.constant 1.000000e+00 : f32
    %178 = vector.broadcast %cst_69 : f32 to vector<8x128xf32>
    %179 = arith.addf %178, %177 : vector<8x128xf32>
    %180 = arith.mulf %174, %179 : vector<8x128xf32>
    %c0_70 = arith.constant 0 : index
    %c0_71 = arith.constant 0 : index
    %181 = vector.load %arg14[%c0_70, %c0_71] : memref<128x32xf32, #tpu.memory_space<vmem>>, vector<128x32xf32>
    %cst_72 = arith.constant dense<0.000000e+00> : vector<8x32xf32>
    %182 = tpu.matmul %180, %181, %cst_72 {dimension_numbers = #tpu.dot_dimension_numbers<[1], [0], [0], [1], [0, 0, 1, 1], [], []>} : vector<8x128xf32>, vector<128x32xf32>, vector<8x32xf32> -> vector<8x32xf32>
    %c0_73 = arith.constant 0 : index
    %c0_74 = arith.constant 0 : index
    %183 = vector.load %arg15[%c0_73, %c0_74] : memref<1x32xf32, #tpu.memory_space<vmem>>, vector<1x32xf32>
    %184 = vector.broadcast %183 : vector<1x32xf32> to vector<8x32xf32>
    %185 = arith.addf %182, %184 : vector<8x32xf32>
    %186 = arith.addf %119, %185 : vector<8x32xf32>
    %c0_75 = arith.constant 0 : index
    %c0_76 = arith.constant 0 : index
    %c0_77 = arith.constant 0 : index
    %187 = vector.load %arg16[%c0_75, %c0_76, %c0_77] : memref<1x8x32xf32, #tpu.memory_space<vmem>>, vector<1x8x32xf32>
    %188 = vector.shape_cast %187 : vector<1x8x32xf32> to vector<8x32xf32>
    %189 = vector.shape_cast %186 : vector<8x32xf32> to vector<1x8x32xf32>
    tpu.vector_store %arg16[%c0_75, %c0_76, %c0_77], %189 {strides = array<i32>} : memref<1x8x32xf32, #tpu.memory_space<vmem>>, vector<1x8x32xf32>,
    return
  }
  func.func @transform_0(%arg0: i32) -> (i32, i32, i32) {
    %c0_i32 = arith.constant 0 : i32
    %c0_i32_0 = arith.constant 0 : i32
    %c0_i32_1 = arith.constant 0 : i32
    return %arg0, %c0_i32, %c0_i32_0 : i32, i32, i32
  }
  func.func @transform_1(%arg0: i32) -> (i32, i32) {
    %c0_i32 = arith.constant 0 : i32
    %c0_i32_0 = arith.constant 0 : i32
    %c0_i32_1 = arith.constant 0 : i32
    return %c0_i32, %c0_i32_0 : i32, i32
  }
  func.func @transform_2(%arg0: i32) -> (i32, i32) {
    %c0_i32 = arith.constant 0 : i32
    %c0_i32_0 = arith.constant 0 : i32
    %c0_i32_1 = arith.constant 0 : i32
    return %c0_i32, %c0_i32_0 : i32, i32
  }
  func.func @transform_3(%arg0: i32) -> (i32, i32) {
    %c0_i32 = arith.constant 0 : i32
    %c0_i32_0 = arith.constant 0 : i32
    %c0_i32_1 = arith.constant 0 : i32
    return %c0_i32, %c0_i32_0 : i32, i32
  }
  func.func @transform_4(%arg0: i32) -> (i32, i32) {
    %c0_i32 = arith.constant 0 : i32
    %c0_i32_0 = arith.constant 0 : i32
    %c0_i32_1 = arith.constant 0 : i32
    return %c0_i32, %c0_i32_0 : i32, i32
  }
  func.func @transform_5(%arg0: i32) -> (i32, i32) {
    %c0_i32 = arith.constant 0 : i32
    %c0_i32_0 = arith.constant 0 : i32
    %c0_i32_1 = arith.constant 0 : i32
    return %c0_i32, %c0_i32_0 : i32, i32
  }
  func.func @transform_6(%arg0: i32) -> (i32, i32) {
    %c0_i32 = arith.constant 0 : i32
    %c0_i32_0 = arith.constant 0 : i32
    %c0_i32_1 = arith.constant 0 : i32
    return %c0_i32, %c0_i32_0 : i32, i32
  }
  func.func @transform_7(%arg0: i32) -> (i32, i32) {
    %c0_i32 = arith.constant 0 : i32
    %c0_i32_0 = arith.constant 0 : i32
    %c0_i32_1 = arith.constant 0 : i32
    return %c0_i32, %c0_i32_0 : i32, i32
  }
  func.func @transform_8(%arg0: i32) -> (i32, i32) {
    %c0_i32 = arith.constant 0 : i32
    %c0_i32_0 = arith.constant 0 : i32
    %c0_i32_1 = arith.constant 0 : i32
    return %c0_i32, %c0_i32_0 : i32, i32
  }
  func.func @transform_9(%arg0: i32) -> (i32, i32) {
    %c0_i32 = arith.constant 0 : i32
    %c0_i32_0 = arith.constant 0 : i32
    %c0_i32_1 = arith.constant 0 : i32
    return %c0_i32, %c0_i32_0 : i32, i32
  }
  func.func @transform_10(%arg0: i32) -> (i32, i32) {
    %c0_i32 = arith.constant 0 : i32
    %c0_i32_0 = arith.constant 0 : i32
    %c0_i32_1 = arith.constant 0 : i32
    return %c0_i32, %c0_i32_0 : i32, i32
  }
  func.func @transform_11(%arg0: i32) -> (i32, i32) {
    %c0_i32 = arith.constant 0 : i32
    %c0_i32_0 = arith.constant 0 : i32
    %c0_i32_1 = arith.constant 0 : i32
    return %c0_i32, %c0_i32_0 : i32, i32
  }
  func.func @transform_12(%arg0: i32) -> (i32, i32) {
    %c0_i32 = arith.constant 0 : i32
    %c0_i32_0 = arith.constant 0 : i32
    %c0_i32_1 = arith.constant 0 : i32
    return %c0_i32, %c0_i32_0 : i32, i32
  }
  func.func @transform_13(%arg0: i32) -> (i32, i32) {
    %c0_i32 = arith.constant 0 : i32
    %c0_i32_0 = arith.constant 0 : i32
    %c0_i32_1 = arith.constant 0 : i32
    return %c0_i32, %c0_i32_0 : i32, i32
  }
  func.func @transform_14(%arg0: i32) -> (i32, i32) {
    %c0_i32 = arith.constant 0 : i32
    %c0_i32_0 = arith.constant 0 : i32
    %c0_i32_1 = arith.constant 0 : i32
    return %c0_i32, %c0_i32_0 : i32, i32
  }
  func.func @transform_15(%arg0: i32) -> (i32, i32, i32) {
    %c0_i32 = arith.constant 0 : i32
    %c0_i32_0 = arith.constant 0 : i32
    %c0_i32_1 = arith.constant 0 : i32
    return %arg0, %c0_i32, %c0_i32_0 : i32, i32, i32
  }
}

</mosaic_0001>

<llo_original>
// kernel: tpu_custom_call.1
$region0: #{tpu_custom_call.1}
  #allocation0 [shape = 'u32[]', space=smem, size = 0x4, offset = 0x4, fixed_abs, tag = 'smem constant byte address 0x4 - core index']
  #allocation1 [shape = 'u32[144,128]{1,0:T(1,128)}', space=vmem, size = 0x12000, scoped, tag = 'internal scratch']
  %s0 = inlined_call_operand.vmem [shape: f32[2,8,32], index: 0, kind: input, shape index: {}]
  %s1 = inlined_call_operand.vmem [shape: f32[1,32], index: 1, kind: input, shape index: {}]
  %s2 = inlined_call_operand.vmem [shape: f32[1,32], index: 2, kind: input, shape index: {}]
  %s3 = inlined_call_operand.vmem [shape: f32[32,96], index: 3, kind: input, shape index: {}]
  %s4 = inlined_call_operand.vmem [shape: f32[1,96], index: 4, kind: input, shape index: {}]
  %s5 = inlined_call_operand.vmem [shape: f32[32,32], index: 5, kind: input, shape index: {}]
  %s6 = inlined_call_operand.vmem [shape: f32[1,32], index: 6, kind: input, shape index: {}]
  %s7 = inlined_call_operand.vmem [shape: f32[1,32], index: 7, kind: input, shape index: {}]
  %s8 = inlined_call_operand.vmem [shape: f32[1,32], index: 8, kind: input, shape index: {}]
  %s9 = inlined_call_operand.vmem [shape: f32[32,128], index: 9, kind: input, shape index: {}]
  %s10 = inlined_call_operand.vmem [shape: f32[1,128], index: 10, kind: input, shape index: {}]
  %s11 = inlined_call_operand.vmem [shape: f32[1,128], index: 11, kind: input, shape index: {}]
  %s12 = inlined_call_operand.vmem [shape: f32[1,128], index: 12, kind: input, shape index: {}]
  %s13 = inlined_call_operand.vmem [shape: f32[128,32], index: 13, kind: input, shape index: {}]
  %s14 = inlined_call_operand.vmem [shape: f32[1,32], index: 14, kind: input, shape index: {}]
  %s15 = inlined_call_operand.hbm [shape: f32[2,8,32], index: 15, kind: output, shape index: {}]
  %s16 = sld [smem:[#allocation0]]
  $region93: #{tpu_custom_call.1} parent=0
    _
  %s18 = ssub.s32 1, %s16
  %s19 = scalar_select 0, %s18, %s16
  $region1: #{tpu_custom_call.1} parent=0
    #allocation2 [shape = 'u8[8192]{0}', space=vmem, size = 0x2000, scoped, tag = 'output window, operand 0']
    #allocation3 [shape = 's32[2]{0}', space=sflag, size = 0x8, scoped, tag = 'scoped memory for tpu_custom_call.1']
    %20 = vsyncpa [#allocation3], 0
    %s21 = scalar_lea.sflag [#allocation3], 1
    %22 = vsyncpa %s21, 0
    loop: start=0, step=1, limit=4
    $region2: #{tpu_custom_call.1} parent=1 // loop_pre_header
      _
    $region3: #{tpu_custom_call.1} parent=1 // loop_header
      %s24 = sphi 0, %s28
      %p25 = scmp.ge.s32.totalorder %s24, 4
      %s34 = sphi 0, %s36
      %s37 = sphi 0, %s34
      %s38 = sphi 0, %s37
      %s54 = sphi 0, %s38
      %s58 = sphi 0, %s58
      %s60 = sphi 0, %s58
      %s61 = sphi 0, %s60
      %s75 = sphi 0, %s61
      %s79 = sphi 0, %s79
      %s81 = sphi 0, %s79
      %s82 = sphi 0, %s81
      %s96 = sphi 0, %s82
      %s100 = sphi 0, %s100
      %s102 = sphi 0, %s100
      %s103 = sphi 0, %s102
      %s117 = sphi 0, %s103
      %s121 = sphi 0, %s121
      %s123 = sphi 0, %s121
      %s124 = sphi 0, %s123
      %s138 = sphi 0, %s124
      %s142 = sphi 0, %s142
      %s144 = sphi 0, %s142
      %s145 = sphi 0, %s144
      %s159 = sphi 0, %s145
      %s163 = sphi 0, %s163
      %s165 = sphi 0, %s163
      %s166 = sphi 0, %s165
      %s180 = sphi 0, %s166
      %s184 = sphi 0, %s184
      %s186 = sphi 0, %s184
      %s187 = sphi 0, %s186
      %s201 = sphi 0, %s187
      %s205 = sphi 0, %s205
      %s207 = sphi 0, %s205
      %s208 = sphi 0, %s207
      %s222 = sphi 0, %s208
      %s226 = sphi 0, %s226
      %s228 = sphi 0, %s226
      %s229 = sphi 0, %s228
      %s243 = sphi 0, %s229
      %s247 = sphi 0, %s247
      %s249 = sphi 0, %s247
      %s250 = sphi 0, %s249
      %s264 = sphi 0, %s250
      %s268 = sphi 0, %s268
      %s270 = sphi 0, %s268
      %s271 = sphi 0, %s270
      %s285 = sphi 0, %s271
      %s289 = sphi 0, %s289
      %s291 = sphi 0, %s289
      %s292 = sphi 0, %s291
      %s306 = sphi 0, %s292
      %s310 = sphi 0, %s310
      %s312 = sphi 0, %s310
      %s313 = sphi 0, %s312
      %s327 = sphi 0, %s313
      %s331 = sphi 0, %s331
      %s333 = sphi 0, %s331
      %s334 = sphi 0, %s333
      %s348 = sphi 0, %s334
      %s354 = sphi 0, %s356
      %s357 = sphi 0, %s354
      %s358 = sphi 0, %s357
      %s374 = sphi 0, %s358
    $region4: #{tpu_custom_call.1} parent=1 // loop_header_branch
      %27 = sbr.rel (%p25) target = $region8
    $region5: #{tpu_custom_call.1} parent=1 // loop_body
      %s29 = ssub.s32 %s24, 1
      %s30 = ssub.s32 %s24, 2
      %s31 = sadd.s32 %s24, 1
      %s32 = ssub.s32 %s24, %s31
      %p33 = scmp.eq.s32.totalorder %s32, 0
      %s35 = sadd.s32 %s34, 1
      %s36 = scalar_select %p33, %s34, %s35
      %p39 = pneg %p33
      %p40 = scmp.eq.s32.totalorder %s24, 1
      %p41 = por %p39, %p40
      %p42 = scmp.ne.s32.totalorder %s34, %s37
      %p43 = scmp.eq.s32.totalorder %s24, 0
      %p44 = por %p42, %p43
      %p45 = scmp.ne.s32.totalorder %s34, %s37
      %p46 = scmp.eq.s32.totalorder %s29, 1
      %p47 = por %p45, %p46
      %p48 = scmp.ne.s32.totalorder %s37, %s38
      %p49 = scmp.eq.s32.totalorder %s29, 0
      %p50 = por %p48, %p49
      %p51 = scmp.ne.s32.totalorder %s37, %s38
      %p52 = scmp.eq.s32.totalorder %s30, 1
      %p53 = por %p51, %p52
      %p55 = scmp.ne.s32.totalorder %s38, %s54
      %p56 = scmp.eq.s32.totalorder %s30, 0
      %p57 = por %p55, %p56
      %s59 = sadd.s32 %s58, 1
      %p62 = scmp.eq.s32.totalorder %s24, 1
      %p63 = scmp.ne.s32.totalorder %s58, %s60
      %p64 = scmp.eq.s32.totalorder %s24, 0
      %p65 = por %p63, %p64
      %p66 = scmp.ne.s32.totalorder %s58, %s60
      %p67 = scmp.eq.s32.totalorder %s29, 1
      %p68 = por %p66, %p67
      %p69 = scmp.ne.s32.totalorder %s60, %s61
      %p70 = scmp.eq.s32.totalorder %s29, 0
      %p71 = por %p69, %p70
      %p72 = scmp.ne.s32.totalorder %s60, %s61
      %p73 = scmp.eq.s32.totalorder %s30, 1
      %p74 = por %p72, %p73
      %p76 = scmp.ne.s32.totalorder %s61, %s75
      %p77 = scmp.eq.s32.totalorder %s30, 0
      %p78 = por %p76, %p77
      %s80 = sadd.s32 %s79, 1
      %p83 = scmp.eq.s32.totalorder %s24, 1
      %p84 = scmp.ne.s32.totalorder %s79, %s81
      %p85 = scmp.eq.s32.totalorder %s24, 0
      %p86 = por %p84, %p85
      %p87 = scmp.ne.s32.totalorder %s79, %s81
      %p88 = scmp.eq.s32.totalorder %s29, 1
      %p89 = por %p87, %p88
      %p90 = scmp.ne.s32.totalorder %s81, %s82
      %p91 = scmp.eq.s32.totalorder %s29, 0
      %p92 = por %p90, %p91
      %p93 = scmp.ne.s32.totalorder %s81, %s82
      %p94 = scmp.eq.s32.totalorder %s30, 1
      %p95 = por %p93, %p94
      %p97 = scmp.ne.s32.totalorder %s82, %s96
      %p98 = scmp.eq.s32.totalorder %s30, 0
      %p99 = por %p97, %p98
      %s101 = sadd.s32 %s100, 1
      %p104 = scmp.eq.s32.totalorder %s24, 1
      %p105 = scmp.ne.s32.totalorder %s100, %s102
      %p106 = scmp.eq.s32.totalorder %s24, 0
      %p107 = por %p105, %p106
      %p108 = scmp.ne.s32.totalorder %s100, %s102
      %p109 = scmp.eq.s32.totalorder %s29, 1
      %p110 = por %p108, %p109
      %p111 = scmp.ne.s32.totalorder %s102, %s103
      %p112 = scmp.eq.s32.totalorder %s29, 0
      %p113 = por %p111, %p112
      %p114 = scmp.ne.s32.totalorder %s102, %s103
      %p115 = scmp.eq.s32.totalorder %s30, 1
      %p116 = por %p114, %p115
      %p118 = scmp.ne.s32.totalorder %s103, %s117
      %p119 = scmp.eq.s32.totalorder %s30, 0
      %p120 = por %p118, %p119
      %s122 = sadd.s32 %s121, 1
      %p125 = scmp.eq.s32.totalorder %s24, 1
      %p126 = scmp.ne.s32.totalorder %s121, %s123
      %p127 = scmp.eq.s32.totalorder %s24, 0
      %p128 = por %p126, %p127
      %p129 = scmp.ne.s32.totalorder %s121, %s123
      %p130 = scmp.eq.s32.totalorder %s29, 1
      %p131 = por %p129, %p130
      %p132 = scmp.ne.s32.totalorder %s123, %s124
      %p133 = scmp.eq.s32.totalorder %s29, 0
      %p134 = por %p132, %p133
      %p135 = scmp.ne.s32.totalorder %s123, %s124
      %p136 = scmp.eq.s32.totalorder %s30, 1
      %p137 = por %p135, %p136
      %p139 = scmp.ne.s32.totalorder %s124, %s138
      %p140 = scmp.eq.s32.totalorder %s30, 0
      %p141 = por %p139, %p140
      %s143 = sadd.s32 %s142, 1
      %p146 = scmp.eq.s32.totalorder %s24, 1
      %p147 = scmp.ne.s32.totalorder %s142, %s144
      %p148 = scmp.eq.s32.totalorder %s24, 0
      %p149 = por %p147, %p148
      %p150 = scmp.ne.s32.totalorder %s142, %s144
      %p151 = scmp.eq.s32.totalorder %s29, 1
      %p152 = por %p150, %p151
      %p153 = scmp.ne.s32.totalorder %s144, %s145
      %p154 = scmp.eq.s32.totalorder %s29, 0
      %p155 = por %p153, %p154
      %p156 = scmp.ne.s32.totalorder %s144, %s145
      %p157 = scmp.eq.s32.totalorder %s30, 1
      %p158 = por %p156, %p157
      %p160 = scmp.ne.s32.totalorder %s145, %s159
      %p161 = scmp.eq.s32.totalorder %s30, 0
      %p162 = por %p160, %p161
      %s164 = sadd.s32 %s163, 1
      %p167 = scmp.eq.s32.totalorder %s24, 1
      %p168 = scmp.ne.s32.totalorder %s163, %s165
      %p169 = scmp.eq.s32.totalorder %s24, 0
      %p170 = por %p168, %p169
      %p171 = scmp.ne.s32.totalorder %s163, %s165
      %p172 = scmp.eq.s32.totalorder %s29, 1
      %p173 = por %p171, %p172
      %p174 = scmp.ne.s32.totalorder %s165, %s166
      %p175 = scmp.eq.s32.totalorder %s29, 0
      %p176 = por %p174, %p175
      %p177 = scmp.ne.s32.totalorder %s165, %s166
      %p178 = scmp.eq.s32.totalorder %s30, 1
      %p179 = por %p177, %p178
      %p181 = scmp.ne.s32.totalorder %s166, %s180
      %p182 = scmp.eq.s32.totalorder %s30, 0
      %p183 = por %p181, %p182
      %s185 = sadd.s32 %s184, 1
      %p188 = scmp.eq.s32.totalorder %s24, 1
      %p189 = scmp.ne.s32.totalorder %s184, %s186
      %p190 = scmp.eq.s32.totalorder %s24, 0
      %p191 = por %p189, %p190
      %p192 = scmp.ne.s32.totalorder %s184, %s186
      %p193 = scmp.eq.s32.totalorder %s29, 1
      %p194 = por %p192, %p193
      %p195 = scmp.ne.s32.totalorder %s186, %s187
      %p196 = scmp.eq.s32.totalorder %s29, 0
      %p197 = por %p195, %p196
      %p198 = scmp.ne.s32.totalorder %s186, %s187
      %p199 = scmp.eq.s32.totalorder %s30, 1
      %p200 = por %p198, %p199
      %p202 = scmp.ne.s32.totalorder %s187, %s201
      %p203 = scmp.eq.s32.totalorder %s30, 0
      %p204 = por %p202, %p203
      %s206 = sadd.s32 %s205, 1
      %p209 = scmp.eq.s32.totalorder %s24, 1
      %p210 = scmp.ne.s32.totalorder %s205, %s207
      %p211 = scmp.eq.s32.totalorder %s24, 0
      %p212 = por %p210, %p211
      %p213 = scmp.ne.s32.totalorder %s205, %s207
      %p214 = scmp.eq.s32.totalorder %s29, 1
      %p215 = por %p213, %p214
      %p216 = scmp.ne.s32.totalorder %s207, %s208
      %p217 = scmp.eq.s32.totalorder %s29, 0
      %p218 = por %p216, %p217
      %p219 = scmp.ne.s32.totalorder %s207, %s208
      %p220 = scmp.eq.s32.totalorder %s30, 1
      %p221 = por %p219, %p220
      %p223 = scmp.ne.s32.totalorder %s208, %s222
      %p224 = scmp.eq.s32.totalorder %s30, 0
      %p225 = por %p223, %p224
      %s227 = sadd.s32 %s226, 1
      %p230 = scmp.eq.s32.totalorder %s24, 1
      %p231 = scmp.ne.s32.totalorder %s226, %s228
      %p232 = scmp.eq.s32.totalorder %s24, 0
      %p233 = por %p231, %p232
      %p234 = scmp.ne.s32.totalorder %s226, %s228
      %p235 = scmp.eq.s32.totalorder %s29, 1
      %p236 = por %p234, %p235
      %p237 = scmp.ne.s32.totalorder %s228, %s229
      %p238 = scmp.eq.s32.totalorder %s29, 0
      %p239 = por %p237, %p238
      %p240 = scmp.ne.s32.totalorder %s228, %s229
      %p241 = scmp.eq.s32.totalorder %s30, 1
      %p242 = por %p240, %p241
      %p244 = scmp.ne.s32.totalorder %s229, %s243
      %p245 = scmp.eq.s32.totalorder %s30, 0
      %p246 = por %p244, %p245
      %s248 = sadd.s32 %s247, 1
      %p251 = scmp.eq.s32.totalorder %s24, 1
      %p252 = scmp.ne.s32.totalorder %s247, %s249
      %p253 = scmp.eq.s32.totalorder %s24, 0
      %p254 = por %p252, %p253
      %p255 = scmp.ne.s32.totalorder %s247, %s249
      %p256 = scmp.eq.s32.totalorder %s29, 1
      %p257 = por %p255, %p256
      %p258 = scmp.ne.s32.totalorder %s249, %s250
      %p259 = scmp.eq.s32.totalorder %s29, 0
      %p260 = por %p258, %p259
      %p261 = scmp.ne.s32.totalorder %s249, %s250
      %p262 = scmp.eq.s32.totalorder %s30, 1
      %p263 = por %p261, %p262
      %p265 = scmp.ne.s32.totalorder %s250, %s264
      %p266 = scmp.eq.s32.totalorder %s30, 0
      %p267 = por %p265, %p266
      %s269 = sadd.s32 %s268, 1
      %p272 = scmp.eq.s32.totalorder %s24, 1
      %p273 = scmp.ne.s32.totalorder %s268, %s270
      %p274 = scmp.eq.s32.totalorder %s24, 0
      %p275 = por %p273, %p274
      %p276 = scmp.ne.s32.totalorder %s268, %s270
      %p277 = scmp.eq.s32.totalorder %s29, 1
      %p278 = por %p276, %p277
      %p279 = scmp.ne.s32.totalorder %s270, %s271
      %p280 = scmp.eq.s32.totalorder %s29, 0
      %p281 = por %p279, %p280
      %p282 = scmp.ne.s32.totalorder %s270, %s271
      %p283 = scmp.eq.s32.totalorder %s30, 1
      %p284 = por %p282, %p283
      %p286 = scmp.ne.s32.totalorder %s271, %s285
      %p287 = scmp.eq.s32.totalorder %s30, 0
      %p288 = por %p286, %p287
      %s290 = sadd.s32 %s289, 1
      %p293 = scmp.eq.s32.totalorder %s24, 1
      %p294 = scmp.ne.s32.totalorder %s289, %s291
      %p295 = scmp.eq.s32.totalorder %s24, 0
      %p296 = por %p294, %p295
      %p297 = scmp.ne.s32.totalorder %s289, %s291
      %p298 = scmp.eq.s32.totalorder %s29, 1
      %p299 = por %p297, %p298
      %p300 = scmp.ne.s32.totalorder %s291, %s292
      %p301 = scmp.eq.s32.totalorder %s29, 0
      %p302 = por %p300, %p301
      %p303 = scmp.ne.s32.totalorder %s291, %s292
      %p304 = scmp.eq.s32.totalorder %s30, 1
      %p305 = por %p303, %p304
      %p307 = scmp.ne.s32.totalorder %s292, %s306
      %p308 = scmp.eq.s32.totalorder %s30, 0
      %p309 = por %p307, %p308
      %s311 = sadd.s32 %s310, 1
      %p314 = scmp.eq.s32.totalorder %s24, 1
      %p315 = scmp.ne.s32.totalorder %s310, %s312
      %p316 = scmp.eq.s32.totalorder %s24, 0
      %p317 = por %p315, %p316
      %p318 = scmp.ne.s32.totalorder %s310, %s312
      %p319 = scmp.eq.s32.totalorder %s29, 1
      %p320 = por %p318, %p319
      %p321 = scmp.ne.s32.totalorder %s312, %s313
      %p322 = scmp.eq.s32.totalorder %s29, 0
      %p323 = por %p321, %p322
      %p324 = scmp.ne.s32.totalorder %s312, %s313
      %p325 = scmp.eq.s32.totalorder %s30, 1
      %p326 = por %p324, %p325
      %p328 = scmp.ne.s32.totalorder %s313, %s327
      %p329 = scmp.eq.s32.totalorder %s30, 0
      %p330 = por %p328, %p329
      %s332 = sadd.s32 %s331, 1
      %p335 = scmp.eq.s32.totalorder %s24, 1
      %p336 = scmp.ne.s32.totalorder %s331, %s333
      %p337 = scmp.eq.s32.totalorder %s24, 0
      %p338 = por %p336, %p337
      %p339 = scmp.ne.s32.totalorder %s331, %s333
      %p340 = scmp.eq.s32.totalorder %s29, 1
      %p341 = por %p339, %p340
      %p342 = scmp.ne.s32.totalorder %s333, %s334
      %p343 = scmp.eq.s32.totalorder %s29, 0
      %p344 = por %p342, %p343
      %p345 = scmp.ne.s32.totalorder %s333, %s334
      %p346 = scmp.eq.s32.totalorder %s30, 1
      %p347 = por %p345, %p346
      %p349 = scmp.ne.s32.totalorder %s334, %s348
      %p350 = scmp.eq.s32.totalorder %s30, 0
      %p351 = por %p349, %p350
      %s352 = ssub.s32 %s24, %s31
      %p353 = scmp.eq.s32.totalorder %s352, 0
      %s355 = sadd.s32 %s354, 1
      %s356 = scalar_select %p353, %s354, %s355
      %p359 = pneg %p353
      %p360 = scmp.eq.s32.totalorder %s24, 1
      %p361 = por %p359, %p360
      %p362 = scmp.ne.s32.totalorder %s354, %s357
      %p363 = scmp.eq.s32.totalorder %s24, 0
      %p364 = por %p362, %p363
      %p365 = scmp.ne.s32.totalorder %s354, %s357
      %p366 = scmp.eq.s32.totalorder %s29, 1
      %p367 = por %p365, %p366
      %p368 = scmp.ne.s32.totalorder %s357, %s358
      %p369 = scmp.eq.s32.totalorder %s29, 0
      %p370 = por %p368, %p369
      %p371 = scmp.ne.s32.totalorder %s357, %s358
      %p372 = scmp.eq.s32.totalorder %s30, 1
      %p373 = por %p371, %p372
      %p375 = scmp.ne.s32.totalorder %s358, %s374
      %p376 = scmp.eq.s32.totalorder %s30, 0
      %p377 = por %p375, %p376
      %p378 = scmp.le.s32.totalorder 1, %s24
      %p379 = scmp.lt.s32.totalorder %s24, 3
      %p380 = pnand %p378, %p379
      %p381 = pneg %p380
      // Predicated region
      $region9: #{tpu_custom_call.1} parent=5 // pred_check
        _
      $region10: #{tpu_custom_call.1} parent=5 // pred_check_branch
        %383 = sbr.rel (%p380) target = $region12
      $region11: #{tpu_custom_call.1} parent=5 // pred_region
        %s384 = ssub.s32 %s24, 1
        // Predicated region
        $region13: #{tpu_custom_call.1} parent=11 // pred_check
          %p385 = pneg %p71
        $region14: #{tpu_custom_call.1} parent=11 // pred_check_branch
          %387 = sbr.rel (%p385) target = $region16
        $region15: #{tpu_custom_call.1} parent=11 // pred_region
          _
        $region16: #{tpu_custom_call.1} parent=11 // pred_fallthru
          _
        // Predicated region
        $region17: #{tpu_custom_call.1} parent=11 // pred_check
          %p388 = pneg %p92
        $region18: #{tpu_custom_call.1} parent=11 // pred_check_branch
          %390 = sbr.rel (%p388) target = $region20
        $region19: #{tpu_custom_call.1} parent=11 // pred_region
          _
        $region20: #{tpu_custom_call.1} parent=11 // pred_fallthru
          _
        // Predicated region
        $region21: #{tpu_custom_call.1} parent=11 // pred_check
          %p391 = pneg %p113
        $region22: #{tpu_custom_call.1} parent=11 // pred_check_branch
          %393 = sbr.rel (%p391) target = $region24
        $region23: #{tpu_custom_call.1} parent=11 // pred_region
          _
        $region24: #{tpu_custom_call.1} parent=11 // pred_fallthru
          _
        // Predicated region
        $region25: #{tpu_custom_call.1} parent=11 // pred_check
          %p394 = pneg %p134
        $region26: #{tpu_custom_call.1} parent=11 // pred_check_branch
          %396 = sbr.rel (%p394) target = $region28
        $region27: #{tpu_custom_call.1} parent=11 // pred_region
          _
        $region28: #{tpu_custom_call.1} parent=11 // pred_fallthru
          _
        // Predicated region
        $region29: #{tpu_custom_call.1} parent=11 // pred_check
          %p397 = pneg %p155
        $region30: #{tpu_custom_call.1} parent=11 // pred_check_branch
          %399 = sbr.rel (%p397) target = $region32
        $region31: #{tpu_custom_call.1} parent=11 // pred_region
          _
        $region32: #{tpu_custom_call.1} parent=11 // pred_fallthru
          _
        // Predicated region
        $region33: #{tpu_custom_call.1} parent=11 // pred_check
          %p400 = pneg %p176
        $region34: #{tpu_custom_call.1} parent=11 // pred_check_branch
          %402 = sbr.rel (%p400) target = $region36
        $region35: #{tpu_custom_call.1} parent=11 // pred_region
          _
        $region36: #{tpu_custom_call.1} parent=11 // pred_fallthru
          _
        // Predicated region
        $region37: #{tpu_custom_call.1} parent=11 // pred_check
          %p403 = pneg %p197
        $region38: #{tpu_custom_call.1} parent=11 // pred_check_branch
          %405 = sbr.rel (%p403) target = $region40
        $region39: #{tpu_custom_call.1} parent=11 // pred_region
          _
        $region40: #{tpu_custom_call.1} parent=11 // pred_fallthru
          _
        // Predicated region
        $region41: #{tpu_custom_call.1} parent=11 // pred_check
          %p406 = pneg %p218
        $region42: #{tpu_custom_call.1} parent=11 // pred_check_branch
          %408 = sbr.rel (%p406) target = $region44
        $region43: #{tpu_custom_call.1} parent=11 // pred_region
          _
        $region44: #{tpu_custom_call.1} parent=11 // pred_fallthru
          _
        // Predicated region
        $region45: #{tpu_custom_call.1} parent=11 // pred_check
          %p409 = pneg %p239
        $region46: #{tpu_custom_call.1} parent=11 // pred_check_branch
          %411 = sbr.rel (%p409) target = $region48
        $region47: #{tpu_custom_call.1} parent=11 // pred_region
          _
        $region48: #{tpu_custom_call.1} parent=11 // pred_fallthru
          _
        // Predicated region
        $region49: #{tpu_custom_call.1} parent=11 // pred_check
          %p412 = pneg %p260
        $region50: #{tpu_custom_call.1} parent=11 // pred_check_branch
          %414 = sbr.rel (%p412) target = $region52
        $region51: #{tpu_custom_call.1} parent=11 // pred_region
          _
        $region52: #{tpu_custom_call.1} parent=11 // pred_fallthru
          _
        // Predicated region
        $region53: #{tpu_custom_call.1} parent=11 // pred_check
          %p415 = pneg %p281
        $region54: #{tpu_custom_call.1} parent=11 // pred_check_branch
          %417 = sbr.rel (%p415) target = $region56
        $region55: #{tpu_custom_call.1} parent=11 // pred_region
          _
        $region56: #{tpu_custom_call.1} parent=11 // pred_fallthru
          _
        // Predicated region
        $region57: #{tpu_custom_call.1} parent=11 // pred_check
          %p418 = pneg %p302
        $region58: #{tpu_custom_call.1} parent=11 // pred_check_branch
          %420 = sbr.rel (%p418) target = $region60
        $region59: #{tpu_custom_call.1} parent=11 // pred_region
          _
        $region60: #{tpu_custom_call.1} parent=11 // pred_fallthru
          _
        // Predicated region
        $region61: #{tpu_custom_call.1} parent=11 // pred_check
          %p421 = pneg %p323
        $region62: #{tpu_custom_call.1} parent=11 // pred_check_branch
          %423 = sbr.rel (%p421) target = $region64
        $region63: #{tpu_custom_call.1} parent=11 // pred_region
          _
        $region64: #{tpu_custom_call.1} parent=11 // pred_fallthru
          _
        // Predicated region
        $region65: #{tpu_custom_call.1} parent=11 // pred_check
          %p424 = pneg %p344
        $region66: #{tpu_custom_call.1} parent=11 // pred_check_branch
          %426 = sbr.rel (%p424) target = $region68
        $region67: #{tpu_custom_call.1} parent=11 // pred_region
          _
        $region68: #{tpu_custom_call.1} parent=11 // pred_fallthru
          _
      $region12: #{tpu_custom_call.1} parent=5 // pred_fallthru
        _
      %p427 = scmp.lt.s32.totalorder %s24, 2
      // Predicated region
      $region69: #{tpu_custom_call.1} parent=5 // pred_check
        %p428 = pneg %p427
      $region70: #{tpu_custom_call.1} parent=5 // pred_check_branch
        %430 = sbr.rel (%p428) target = $region72
      $region71: #{tpu_custom_call.1} parent=5 // pred_region
        // Predicated region
        $region73: #{tpu_custom_call.1} parent=71 // pred_check
          %p431 = pneg %p44
        $region74: #{tpu_custom_call.1} parent=71 // pred_check_branch
          %433 = sbr.rel (%p431) target = $region76
        $region75: #{tpu_custom_call.1} parent=71 // pred_region
          %p434 = scmp.lt.s32.totalorder %s24, 1
          %s435 = scalar_select %p434, %s24, 1
          %s436 = smul.addr %s435, 8
          %s437 = scalar_lea.vmem %s0, %s436
        $region76: #{tpu_custom_call.1} parent=71 // pred_fallthru
          _
      $region72: #{tpu_custom_call.1} parent=5 // pred_fallthru
        _
      %p438 = scmp.le.s32.totalorder 1, %s24
      %p439 = scmp.lt.s32.totalorder %s24, 3
      %p440 = pnand %p438, %p439
      %p441 = pneg %p440
      // Predicated region
      $region77: #{tpu_custom_call.1} parent=5 // pred_check
        _
      $region78: #{tpu_custom_call.1} parent=5 // pred_check_branch
        %443 = sbr.rel (%p440) target = $region80
      $region79: #{tpu_custom_call.1} parent=5 // pred_region
        %s444 = ssub.s32 %s24, 1
        %p445 = scmp.lt.s32.totalorder %s29, 1
        %s446 = scalar_select %p445, %s29, 1
        %s447 = smul.addr %s446, 8
        %s448 = scalar_lea.vmem %s0, %s447
        %p449 = pneg %p50
        %p450 = pneg %p47
        %p451 = pneg %p71
        %p452 = pneg %p68
        %p453 = pneg %p92
        %p454 = pneg %p89
        %p455 = pneg %p113
        %p456 = pneg %p110
        %p457 = pneg %p134
        %p458 = pneg %p131
        %p459 = pneg %p155
        %p460 = pneg %p152
        %p461 = pneg %p176
        %p462 = pneg %p173
        %p463 = pneg %p197
        %p464 = pneg %p194
        %p465 = pneg %p218
        %p466 = pneg %p215
        %p467 = pneg %p239
        %p468 = pneg %p236
        %p469 = pneg %p260
        %p470 = pneg %p257
        %p471 = pneg %p281
        %p472 = pneg %p278
        %p473 = pneg %p302
        %p474 = pneg %p299
        %p475 = pneg %p323
        %p476 = pneg %p320
        %p477 = pneg %p344
        %p478 = pneg %p341
        %p479 = pneg %p370
        %p480 = pneg %p367
        %s481 = sand.u32 %s357, 1
        %s482 = scalar_lea.sflag [#allocation3], %s481
        %s483 = sand.u32 %s357, 1
        %s484 = smul.addr %s483, 8
        %s485 = scalar_lea.vmem [#allocation2], %s484
        %p486 = scmp.lt.s32.totalorder %s29, 1
        %s487 = scalar_select %p486, %s29, 1
        %s488 = smul.addr %s487, 8
        %s489 = scalar_lea.vmem %s0, %s488
        %v490 = vld [vmem:[%s489] sm:$0xff]
        %vm491 = vcmask 261120
        %v492 = vsel %vm491, %v490, 0.0
        %493 = vadd.xlane.f32.xlu0 %v492
        %v494 = vpop.xlane.xlu0 %493
        %v495 = vrcp.pop 32.0
        %v496 = vmul.f32 %v494, %v495
        %v497 = vsub.f32 %v490, %v496
        %v498 = vmul.f32 %v497, %v497
        %v499 = vsel %vm491, %v498, 0.0
        %500 = vadd.xlane.f32.xlu0 %v499
        %v501 = vpop.xlane.xlu0 %500
        %v502 = vmul.f32 %v501, %v495
        %v503 = vadd.f32 %v502, 1e-05
        %v504 = vrsqrt.pop %v503
        %v505 = vmul.f32 %v497, %v504
        %v506 = vld [vmem:[%s1] sm:$0x1]
        %v508 = vlaneseq
        %v509 = vshrl.u32 %v508, 7
        %v510 = vsub.s32 0, %v509
        %v511 = vrot.slane %v506, %v510
        %v513 = vmul.f32 %v505, %v511
        %v514 = vld [vmem:[%s2] sm:$0x1]
        %v516 = vlaneseq
        %v517 = vshrl.u32 %v516, 7
        %v518 = vsub.s32 0, %v517
        %v519 = vrot.slane %v514, %v518
        %v521 = vadd.f32 %v513, %v519
        %v522 = vld [vmem:[%s3] sm:$0xff]
        %v523 = vld [vmem:[%s3 + $0x8] sm:$0xff]
        %v524 = vld [vmem:[%s3 + $0x10] sm:$0xff]
        %v525 = vld [vmem:[%s3 + $0x18] sm:$0xff]
        %v526 = vld [vmem:[%s4] sm:$0x1]
        %v528 = vlaneseq
        %v529 = vshrl.u32 %v528, 7
        %v530 = vsub.s32 0, %v529
        %v531 = vrot.slane %v526, %v530
        %v534 = vsel %vm491, %v521, 0
        %536 = vmatprep.subr.mxu0 0.0
        %537 = vmatpush1.msra.mxu0 %v522
        %538 = vmatprep.subr.mxu0 0.0
        %539 = vmatpush1.msra.mxu0 %v523
        %540 = vmatprep.subr.mxu0 0.0
        %541 = vmatpush1.msra.mxu0 %v524
        %542 = vmatprep.subr.mxu0 0.0
        %543 = vmatpush1.msra.mxu0 %v525
        %544 = vmatprep.subr.mxu0 0.0
        %545 = vmatpush1.msra.mxu0 0.0
        %546 = vmatprep.subr.mxu0 0.0
        %547 = vmatpush1.msra.mxu0 0.0
        %548 = vmatprep.subr.mxu0 0.0
        %549 = vmatpush1.msra.mxu0 0.0
        %550 = vmatprep.subr.mxu0 0.0
        %551 = vmatpush1.msra.mxu0 0.0
        %552 = vmatprep.subr.mxu0 0.0
        %553 = vmatpush1.msra.mxu0 0.0
        %554 = vmatprep.subr.mxu0 0.0
        %555 = vmatpush1.msra.mxu0 0.0
        %556 = vmatprep.subr.mxu0 0.0
        %557 = vmatpush1.msra.mxu0 0.0
        %558 = vmatprep.subr.mxu0 0.0
        %559 = vmatpush1.msra.mxu0 0.0
        %560 = vmatprep.subr.mxu0 0.0
        %561 = vmatpush1.msra.mxu0 0.0
        %562 = vmatprep.subr.mxu0 0.0
        %563 = vmatpush1.msra.mxu0 0.0
        %564 = vmatprep.subr.mxu0 0.0
        %565 = vmatpush1.msra.mxu0 0.0
        %566 = vmatprep.subr.mxu0 0.0
        %567 = vmatpush1.msra.mxu0 0.0
        %568 = vmatprep.subr.mxu0 0.0
        %569 = vmatpush1.msra.mxu0 0.0
        %570 = vmatprep.subr.mxu0 0.0
        %571 = vmatpush1.msra.mxu0 0.0
        %572 = vmatprep.subr.mxu0 0.0
        %573 = vmatpush1.msra.mxu0 0.0
        %574 = vmatprep.subr.mxu0 0.0
        %575 = vmatpush1.msra.mxu0 0.0
        %576 = vmatprep.subr.mxu0 0.0
        %577 = vmatpush1.msra.mxu0 0.0
        %578 = vmatprep.subr.mxu0 0.0
        %579 = vmatpush1.msra.mxu0 0.0
        %580 = vmatprep.subr.mxu0 0.0
        %581 = vmatpush1.msra.mxu0 0.0
        %582 = vmatprep.subr.mxu0 0.0
        %583 = vmatpush1.msra.mxu0 0.0
        %584 = vmatprep.subr.mxu0 0.0
        %585 = vmatpush1.msra.mxu0 0.0
        %586 = vmatprep.subr.mxu0 0.0
        %587 = vmatpush1.msra.mxu0 0.0
        %588 = vmatprep.subr.mxu0 0.0
        %589 = vmatpush1.msra.mxu0 0.0
        %590 = vmatprep.subr.mxu0 0.0
        %591 = vmatpush1.msra.mxu0 0.0
        %592 = vmatprep.subr.mxu0 0.0
        %593 = vmatpush1.msra.mxu0 0.0
        %594 = vmatprep.subr.mxu0 0.0
        %595 = vmatpush1.msra.mxu0 0.0
        %596 = vmatprep.subr.mxu0 0.0
        %597 = vmatpush1.msra.mxu0 0.0
        %598 = vmatprep.subr.mxu0 0.0
        %599 = vmatpush1.msra.mxu0 0.0
        %600 = vmatprep.mubr.f32.mxu0 0.0
        %601 = vmatmul.mubr.f32.gmra.mrb[0].mxu0 %v534
        %v602 = vpop.f32.mrb[0].mxu0
        %v603 = vadd.f32 %v531, %v602
        %v604 = vpop.f32.mrb[0].mxu0
        %605 = vdwg.mxu0
        %v606 = vlaneseq
        %v607 = vshrl.u32 %v606, 7
        %v608 = vlaneseq
        %v609 = vand.u32 %v608, 127
        %vm610 = vcmp.le.s32.totalorder %v609, %v607
        %612 = vrot.lane.b32.xlu0 %v603, 96
        %v613 = vpop.permute.xlu0 %612
        %vm614 = vcmask 64512
        %v615 = vsel %vm614, %v603, 0
        %v617 = vsel %vm614, %v613, 0
        %619 = vmatprep.subr.mxu0 0.0
        %620 = vmatpush1.xpose.msra.mxu0 %v617
        %621 = vmatprep.subr.mxu0 0.0
        %622 = vmatpush1.xpose.msra.mxu0 0.0
        %623 = vmatprep.subr.mxu0 0.0
        %624 = vmatpush1.xpose.msra.mxu0 0.0
        %625 = vmatprep.subr.mxu0 0.0
        %626 = vmatpush1.xpose.msra.mxu0 0.0
        %627 = vmatprep.subr.mxu0 0.0
        %628 = vmatpush1.xpose.msra.mxu0 0.0
        %629 = vmatprep.subr.mxu0 0.0
        %630 = vmatpush1.xpose.msra.mxu0 0.0
        %631 = vmatprep.subr.mxu0 0.0
        %632 = vmatpush1.xpose.msra.mxu0 0.0
        %633 = vmatprep.subr.mxu0 0.0
        %634 = vmatpush1.xpose.msra.mxu0 0.0
        %635 = vmatprep.subr.mxu0 0.0
        %636 = vmatpush1.xpose.msra.mxu0 0.0
        %637 = vmatprep.subr.mxu0 0.0
        %638 = vmatpush1.xpose.msra.mxu0 0.0
        %639 = vmatprep.subr.mxu0 0.0
        %640 = vmatpush1.xpose.msra.mxu0 0.0
        %641 = vmatprep.subr.mxu0 0.0
        %642 = vmatpush1.xpose.msra.mxu0 0.0
        %643 = vmatprep.subr.mxu0 0.0
        %644 = vmatpush1.xpose.msra.mxu0 0.0
        %645 = vmatprep.subr.mxu0 0.0
        %646 = vmatpush1.xpose.msra.mxu0 0.0
        %647 = vmatprep.subr.mxu0 0.0
        %648 = vmatpush1.xpose.msra.mxu0 0.0
        %649 = vmatprep.subr.mxu0 0.0
        %650 = vmatpush1.xpose.msra.mxu0 0.0
        %651 = vmatprep.subr.mxu0 0.0
        %652 = vmatpush1.xpose.msra.mxu0 0.0
        %653 = vmatprep.subr.mxu0 0.0
        %654 = vmatpush1.xpose.msra.mxu0 0.0
        %655 = vmatprep.subr.mxu0 0.0
        %656 = vmatpush1.xpose.msra.mxu0 0.0
        %657 = vmatprep.subr.mxu0 0.0
        %658 = vmatpush1.xpose.msra.mxu0 0.0
        %659 = vmatprep.subr.mxu0 0.0
        %660 = vmatpush1.xpose.msra.mxu0 0.0
        %661 = vmatprep.subr.mxu0 0.0
        %662 = vmatpush1.xpose.msra.mxu0 0.0
        %663 = vmatprep.subr.mxu0 0.0
        %664 = vmatpush1.xpose.msra.mxu0 0.0
        %665 = vmatprep.subr.mxu0 0.0
        %666 = vmatpush1.xpose.msra.mxu0 0.0
        %667 = vmatprep.subr.mxu0 0.0
        %668 = vmatpush1.xpose.msra.mxu0 0.0
        %669 = vmatprep.subr.mxu0 0.0
        %670 = vmatpush1.xpose.msra.mxu0 0.0
        %671 = vmatprep.subr.mxu0 0.0
        %672 = vmatpush1.xpose.msra.mxu0 0.0
        %673 = vmatprep.subr.mxu0 0.0
        %674 = vmatpush1.xpose.msra.mxu0 0.0
        %675 = vmatprep.subr.mxu0 0.0
        %676 = vmatpush1.xpose.msra.mxu0 0.0
        %677 = vmatprep.subr.mxu0 0.0
        %678 = vmatpush1.xpose.msra.mxu0 0.0
        %679 = vmatprep.subr.mxu0 0.0
        %680 = vmatpush1.xpose.msra.mxu0 0.0
        %681 = vmatprep.subr.mxu0 0.0
        %682 = vmatpush1.xpose.msra.mxu0 0.0
        %683 = vmatprep.mubr.f32.mxu0 0.0
        %684 = vmatmul.mubr.f32.gmra.mrb[0].mxu0 %v615
        %v685 = vpop.f32.mrb[0].mxu0
        %v686 = vadd.f32 0.0, %v685
        %v687 = vpop.f32.mrb[0].mxu0
        %688 = vdwg.mxu0
        %v689 = vmul.f32 %v686, 0.35355338
        %v690 = vsel %vm610, %v689, -inf
        %v691 = vsel %vm614, %v690, -inf
        %692 = vmax.xlane.f32.xlu0 %v691
        %v693 = vpop.xlane.xlu0 %692
        %v694 = vsub.f32 %v690, %v693
        %v695 = vmul.f32 %v694, 1.442695
        %v696 = vpow.pop %v695
        %v697 = vsel %vm614, %v696, 0.0
        %698 = vadd.xlane.f32.xlu0 %v697
        %v699 = vpop.xlane.xlu0 %698
        %v700 = vrcp.pop %v699
        %v701 = vmul.f32 %v696, %v700
        %702 = vrot.lane.b32.xlu0 %v603, 64
        %v703 = vpop.permute.xlu0 %702
        %v706 = vsel %vm614, %v701, 0
        %708 = vmatprep.subr.mxu0 0.0
        %709 = vmatpush1.msra.mxu0 %v703
        %710 = vmatprep.subr.mxu0 0.0
        %711 = vmatpush1.msra.mxu0 0.0
        %712 = vmatprep.subr.mxu0 0.0
        %713 = vmatpush1.msra.mxu0 0.0
        %714 = vmatprep.subr.mxu0 0.0
        %715 = vmatpush1.msra.mxu0 0.0
        %716 = vmatprep.subr.mxu0 0.0
        %717 = vmatpush1.msra.mxu0 0.0
        %718 = vmatprep.subr.mxu0 0.0
        %719 = vmatpush1.msra.mxu0 0.0
        %720 = vmatprep.subr.mxu0 0.0
        %721 = vmatpush1.msra.mxu0 0.0
        %722 = vmatprep.subr.mxu0 0.0
        %723 = vmatpush1.msra.mxu0 0.0
        %724 = vmatprep.subr.mxu0 0.0
        %725 = vmatpush1.msra.mxu0 0.0
        %726 = vmatprep.subr.mxu0 0.0
        %727 = vmatpush1.msra.mxu0 0.0
        %728 = vmatprep.subr.mxu0 0.0
        %729 = vmatpush1.msra.mxu0 0.0
        %730 = vmatprep.subr.mxu0 0.0
        %731 = vmatpush1.msra.mxu0 0.0
        %732 = vmatprep.subr.mxu0 0.0
        %733 = vmatpush1.msra.mxu0 0.0
        %734 = vmatprep.subr.mxu0 0.0
        %735 = vmatpush1.msra.mxu0 0.0
        %736 = vmatprep.subr.mxu0 0.0
        %737 = vmatpush1.msra.mxu0 0.0
        %738 = vmatprep.subr.mxu0 0.0
        %739 = vmatpush1.msra.mxu0 0.0
        %740 = vmatprep.subr.mxu0 0.0
        %741 = vmatpush1.msra.mxu0 0.0
        %742 = vmatprep.subr.mxu0 0.0
        %743 = vmatpush1.msra.mxu0 0.0
        %744 = vmatprep.subr.mxu0 0.0
        %745 = vmatpush1.msra.mxu0 0.0
        %746 = vmatprep.subr.mxu0 0.0
        %747 = vmatpush1.msra.mxu0 0.0
        %748 = vmatprep.subr.mxu0 0.0
        %749 = vmatpush1.msra.mxu0 0.0
        %750 = vmatprep.subr.mxu0 0.0
        %751 = vmatpush1.msra.mxu0 0.0
        %752 = vmatprep.subr.mxu0 0.0
        %753 = vmatpush1.msra.mxu0 0.0
        %754 = vmatprep.subr.mxu0 0.0
        %755 = vmatpush1.msra.mxu0 0.0
        %756 = vmatprep.subr.mxu0 0.0
        %757 = vmatpush1.msra.mxu0 0.0
        %758 = vmatprep.subr.mxu0 0.0
        %759 = vmatpush1.msra.mxu0 0.0
        %760 = vmatprep.subr.mxu0 0.0
        %761 = vmatpush1.msra.mxu0 0.0
        %762 = vmatprep.subr.mxu0 0.0
        %763 = vmatpush1.msra.mxu0 0.0
        %764 = vmatprep.subr.mxu0 0.0
        %765 = vmatpush1.msra.mxu0 0.0
        %766 = vmatprep.subr.mxu0 0.0
        %767 = vmatpush1.msra.mxu0 0.0
        %768 = vmatprep.subr.mxu0 0.0
        %769 = vmatpush1.msra.mxu0 0.0
        %770 = vmatprep.subr.mxu0 0.0
        %771 = vmatpush1.msra.mxu0 0.0
        %772 = vmatprep.mubr.f32.mxu0 0.0
        %773 = vmatmul.mubr.f32.gmra.mrb[0].mxu0 %v706
        %v774 = vpop.f32.mrb[0].mxu0
        %v775 = vadd.f32 0.0, %v774
        %v776 = vpop.f32.mrb[0].mxu0
        %777 = vdwg.mxu0
        %778 = vrot.lane.b32.xlu0 %v603, 120
        %v779 = vpop.permute.xlu0 %778
        %780 = vrot.lane.b32.xlu0 %v603, 88
        %v781 = vpop.permute.xlu0 %780
        %v782 = vsel %vm614, %v779, 0
        %v784 = vsel %vm614, %v781, 0
        %786 = vmatprep.subr.mxu0 0.0
        %787 = vmatpush1.xpose.msra.mxu0 %v784
        %788 = vmatprep.subr.mxu0 0.0
        %789 = vmatpush1.xpose.msra.mxu0 0.0
        %790 = vmatprep.subr.mxu0 0.0
        %791 = vmatpush1.xpose.msra.mxu0 0.0
        %792 = vmatprep.subr.mxu0 0.0
        %793 = vmatpush1.xpose.msra.mxu0 0.0
        %794 = vmatprep.subr.mxu0 0.0
        %795 = vmatpush1.xpose.msra.mxu0 0.0
        %796 = vmatprep.subr.mxu0 0.0
        %797 = vmatpush1.xpose.msra.mxu0 0.0
        %798 = vmatprep.subr.mxu0 0.0
        %799 = vmatpush1.xpose.msra.mxu0 0.0
        %800 = vmatprep.subr.mxu0 0.0
        %801 = vmatpush1.xpose.msra.mxu0 0.0
        %802 = vmatprep.subr.mxu0 0.0
        %803 = vmatpush1.xpose.msra.mxu0 0.0
        %804 = vmatprep.subr.mxu0 0.0
        %805 = vmatpush1.xpose.msra.mxu0 0.0
        %806 = vmatprep.subr.mxu0 0.0
        %807 = vmatpush1.xpose.msra.mxu0 0.0
        %808 = vmatprep.subr.mxu0 0.0
        %809 = vmatpush1.xpose.msra.mxu0 0.0
        %810 = vmatprep.subr.mxu0 0.0
        %811 = vmatpush1.xpose.msra.mxu0 0.0
        %812 = vmatprep.subr.mxu0 0.0
        %813 = vmatpush1.xpose.msra.mxu0 0.0
        %814 = vmatprep.subr.mxu0 0.0
        %815 = vmatpush1.xpose.msra.mxu0 0.0
        %816 = vmatprep.subr.mxu0 0.0
        %817 = vmatpush1.xpose.msra.mxu0 0.0
        %818 = vmatprep.subr.mxu0 0.0
        %819 = vmatpush1.xpose.msra.mxu0 0.0
        %820 = vmatprep.subr.mxu0 0.0
        %821 = vmatpush1.xpose.msra.mxu0 0.0
        %822 = vmatprep.subr.mxu0 0.0
        %823 = vmatpush1.xpose.msra.mxu0 0.0
        %824 = vmatprep.subr.mxu0 0.0
        %825 = vmatpush1.xpose.msra.mxu0 0.0
        %826 = vmatprep.subr.mxu0 0.0
        %827 = vmatpush1.xpose.msra.mxu0 0.0
        %828 = vmatprep.subr.mxu0 0.0
        %829 = vmatpush1.xpose.msra.mxu0 0.0
        %830 = vmatprep.subr.mxu0 0.0
        %831 = vmatpush1.xpose.msra.mxu0 0.0
        %832 = vmatprep.subr.mxu0 0.0
        %833 = vmatpush1.xpose.msra.mxu0 0.0
        %834 = vmatprep.subr.mxu0 0.0
        %835 = vmatpush1.xpose.msra.mxu0 0.0
        %836 = vmatprep.subr.mxu0 0.0
        %837 = vmatpush1.xpose.msra.mxu0 0.0
        %838 = vmatprep.subr.mxu0 0.0
        %839 = vmatpush1.xpose.msra.mxu0 0.0
        %840 = vmatprep.subr.mxu0 0.0
        %841 = vmatpush1.xpose.msra.mxu0 0.0
        %842 = vmatprep.subr.mxu0 0.0
        %843 = vmatpush1.xpose.msra.mxu0 0.0
        %844 = vmatprep.subr.mxu0 0.0
        %845 = vmatpush1.xpose.msra.mxu0 0.0
        %846 = vmatprep.subr.mxu0 0.0
        %847 = vmatpush1.xpose.msra.mxu0 0.0
        %848 = vmatprep.subr.mxu0 0.0
        %849 = vmatpush1.xpose.msra.mxu0 0.0
        %850 = vmatprep.mubr.f32.mxu0 0.0
        %851 = vmatmul.mubr.f32.gmra.mrb[0].mxu0 %v782
        %v852 = vpop.f32.mrb[0].mxu0
        %v853 = vadd.f32 0.0, %v852
        %v854 = vpop.f32.mrb[0].mxu0
        %855 = vdwg.mxu0
        %v856 = vmul.f32 %v853, 0.35355338
        %v857 = vsel %vm610, %v856, -inf
        %v858 = vsel %vm614, %v857, -inf
        %859 = vmax.xlane.f32.xlu0 %v858
        %v860 = vpop.xlane.xlu0 %859
        %v861 = vsub.f32 %v857, %v860
        %v862 = vmul.f32 %v861, 1.442695
        %v863 = vpow.pop %v862
        %v864 = vsel %vm614, %v863, 0.0
        %865 = vadd.xlane.f32.xlu0 %v864
        %v866 = vpop.xlane.xlu0 %865
        %v867 = vrcp.pop %v866
        %v868 = vmul.f32 %v863, %v867
        %869 = vrot.lane.b32.xlu0 %v603, 56
        %v870 = vpop.permute.xlu0 %869
        %v873 = vsel %vm614, %v868, 0
        %875 = vmatprep.subr.mxu0 0.0
        %876 = vmatpush1.msra.mxu0 %v870
        %877 = vmatprep.subr.mxu0 0.0
        %878 = vmatpush1.msra.mxu0 0.0
        %879 = vmatprep.subr.mxu0 0.0
        %880 = vmatpush1.msra.mxu0 0.0
        %881 = vmatprep.subr.mxu0 0.0
        %882 = vmatpush1.msra.mxu0 0.0
        %883 = vmatprep.subr.mxu0 0.0
        %884 = vmatpush1.msra.mxu0 0.0
        %885 = vmatprep.subr.mxu0 0.0
        %886 = vmatpush1.msra.mxu0 0.0
        %887 = vmatprep.subr.mxu0 0.0
        %888 = vmatpush1.msra.mxu0 0.0
        %889 = vmatprep.subr.mxu0 0.0
        %890 = vmatpush1.msra.mxu0 0.0
        %891 = vmatprep.subr.mxu0 0.0
        %892 = vmatpush1.msra.mxu0 0.0
        %893 = vmatprep.subr.mxu0 0.0
        %894 = vmatpush1.msra.mxu0 0.0
        %895 = vmatprep.subr.mxu0 0.0
        %896 = vmatpush1.msra.mxu0 0.0
        %897 = vmatprep.subr.mxu0 0.0
        %898 = vmatpush1.msra.mxu0 0.0
        %899 = vmatprep.subr.mxu0 0.0
        %900 = vmatpush1.msra.mxu0 0.0
        %901 = vmatprep.subr.mxu0 0.0
        %902 = vmatpush1.msra.mxu0 0.0
        %903 = vmatprep.subr.mxu0 0.0
        %904 = vmatpush1.msra.mxu0 0.0
        %905 = vmatprep.subr.mxu0 0.0
        %906 = vmatpush1.msra.mxu0 0.0
        %907 = vmatprep.subr.mxu0 0.0
        %908 = vmatpush1.msra.mxu0 0.0
        %909 = vmatprep.subr.mxu0 0.0
        %910 = vmatpush1.msra.mxu0 0.0
        %911 = vmatprep.subr.mxu0 0.0
        %912 = vmatpush1.msra.mxu0 0.0
        %913 = vmatprep.subr.mxu0 0.0
        %914 = vmatpush1.msra.mxu0 0.0
        %915 = vmatprep.subr.mxu0 0.0
        %916 = vmatpush1.msra.mxu0 0.0
        %917 = vmatprep.subr.mxu0 0.0
        %918 = vmatpush1.msra.mxu0 0.0
        %919 = vmatprep.subr.mxu0 0.0
        %920 = vmatpush1.msra.mxu0 0.0
        %921 = vmatprep.subr.mxu0 0.0
        %922 = vmatpush1.msra.mxu0 0.0
        %923 = vmatprep.subr.mxu0 0.0
        %924 = vmatpush1.msra.mxu0 0.0
        %925 = vmatprep.subr.mxu0 0.0
        %926 = vmatpush1.msra.mxu0 0.0
        %927 = vmatprep.subr.mxu0 0.0
        %928 = vmatpush1.msra.mxu0 0.0
        %929 = vmatprep.subr.mxu0 0.0
        %930 = vmatpush1.msra.mxu0 0.0
        %931 = vmatprep.subr.mxu0 0.0
        %932 = vmatpush1.msra.mxu0 0.0
        %933 = vmatprep.subr.mxu0 0.0
        %934 = vmatpush1.msra.mxu0 0.0
        %935 = vmatprep.subr.mxu0 0.0
        %936 = vmatpush1.msra.mxu0 0.0
        %937 = vmatprep.subr.mxu0 0.0
        %938 = vmatpush1.msra.mxu0 0.0
        %939 = vmatprep.mubr.f32.mxu0 0.0
        %940 = vmatmul.mubr.f32.gmra.mrb[0].mxu0 %v873
        %v941 = vpop.f32.mrb[0].mxu0
        %v942 = vadd.f32 0.0, %v941
        %v943 = vpop.f32.mrb[0].mxu0
        %944 = vdwg.mxu0
        %945 = vrot.lane.b32.xlu0 %v603, 112
        %v946 = vpop.permute.xlu0 %945
        %947 = vrot.lane.b32.xlu0 %v603, 80
        %v948 = vpop.permute.xlu0 %947
        %v949 = vsel %vm614, %v946, 0
        %v951 = vsel %vm614, %v948, 0
        %953 = vmatprep.subr.mxu0 0.0
        %954 = vmatpush1.xpose.msra.mxu0 %v951
        %955 = vmatprep.subr.mxu0 0.0
        %956 = vmatpush1.xpose.msra.mxu0 0.0
        %957 = vmatprep.subr.mxu0 0.0
        %958 = vmatpush1.xpose.msra.mxu0 0.0
        %959 = vmatprep.subr.mxu0 0.0
        %960 = vmatpush1.xpose.msra.mxu0 0.0
        %961 = vmatprep.subr.mxu0 0.0
        %962 = vmatpush1.xpose.msra.mxu0 0.0
        %963 = vmatprep.subr.mxu0 0.0
        %964 = vmatpush1.xpose.msra.mxu0 0.0
        %965 = vmatprep.subr.mxu0 0.0
        %966 = vmatpush1.xpose.msra.mxu0 0.0
        %967 = vmatprep.subr.mxu0 0.0
        %968 = vmatpush1.xpose.msra.mxu0 0.0
        %969 = vmatprep.subr.mxu0 0.0
        %970 = vmatpush1.xpose.msra.mxu0 0.0
        %971 = vmatprep.subr.mxu0 0.0
        %972 = vmatpush1.xpose.msra.mxu0 0.0
        %973 = vmatprep.subr.mxu0 0.0
        %974 = vmatpush1.xpose.msra.mxu0 0.0
        %975 = vmatprep.subr.mxu0 0.0
        %976 = vmatpush1.xpose.msra.mxu0 0.0
        %977 = vmatprep.subr.mxu0 0.0
        %978 = vmatpush1.xpose.msra.mxu0 0.0
        %979 = vmatprep.subr.mxu0 0.0
        %980 = vmatpush1.xpose.msra.mxu0 0.0
        %981 = vmatprep.subr.mxu0 0.0
        %982 = vmatpush1.xpose.msra.mxu0 0.0
        %983 = vmatprep.subr.mxu0 0.0
        %984 = vmatpush1.xpose.msra.mxu0 0.0
        %985 = vmatprep.subr.mxu0 0.0
        %986 = vmatpush1.xpose.msra.mxu0 0.0
        %987 = vmatprep.subr.mxu0 0.0
        %988 = vmatpush1.xpose.msra.mxu0 0.0
        %989 = vmatprep.subr.mxu0 0.0
        %990 = vmatpush1.xpose.msra.mxu0 0.0
        %991 = vmatprep.subr.mxu0 0.0
        %992 = vmatpush1.xpose.msra.mxu0 0.0
        %993 = vmatprep.subr.mxu0 0.0
        %994 = vmatpush1.xpose.msra.mxu0 0.0
        %995 = vmatprep.subr.mxu0 0.0
        %996 = vmatpush1.xpose.msra.mxu0 0.0
        %997 = vmatprep.subr.mxu0 0.0
        %998 = vmatpush1.xpose.msra.mxu0 0.0
        %999 = vmatprep.subr.mxu0 0.0
        %1000 = vmatpush1.xpose.msra.mxu0 0.0
        %1001 = vmatprep.subr.mxu0 0.0
        %1002 = vmatpush1.xpose.msra.mxu0 0.0
        %1003 = vmatprep.subr.mxu0 0.0
        %1004 = vmatpush1.xpose.msra.mxu0 0.0
        %1005 = vmatprep.subr.mxu0 0.0
        %1006 = vmatpush1.xpose.msra.mxu0 0.0
        %1007 = vmatprep.subr.mxu0 0.0
        %1008 = vmatpush1.xpose.msra.mxu0 0.0
        %1009 = vmatprep.subr.mxu0 0.0
        %1010 = vmatpush1.xpose.msra.mxu0 0.0
        %1011 = vmatprep.subr.mxu0 0.0
        %1012 = vmatpush1.xpose.msra.mxu0 0.0
        %1013 = vmatprep.subr.mxu0 0.0
        %1014 = vmatpush1.xpose.msra.mxu0 0.0
        %1015 = vmatprep.subr.mxu0 0.0
        %1016 = vmatpush1.xpose.msra.mxu0 0.0
        %1017 = vmatprep.mubr.f32.mxu0 0.0
        %1018 = vmatmul.mubr.f32.gmra.mrb[0].mxu0 %v949
        %v1019 = vpop.f32.mrb[0].mxu0
        %v1020 = vadd.f32 0.0, %v1019
        %v1021 = vpop.f32.mrb[0].mxu0
        %1022 = vdwg.mxu0
        %v1023 = vmul.f32 %v1020, 0.35355338
        %v1024 = vsel %vm610, %v1023, -inf
        %v1025 = vsel %vm614, %v1024, -inf
        %1026 = vmax.xlane.f32.xlu0 %v1025
        %v1027 = vpop.xlane.xlu0 %1026
        %v1028 = vsub.f32 %v1024, %v1027
        %v1029 = vmul.f32 %v1028, 1.442695
        %v1030 = vpow.pop %v1029
        %v1031 = vsel %vm614, %v1030, 0.0
        %1032 = vadd.xlane.f32.xlu0 %v1031
        %v1033 = vpop.xlane.xlu0 %1032
        %v1034 = vrcp.pop %v1033
        %v1035 = vmul.f32 %v1030, %v1034
        %1036 = vrot.lane.b32.xlu0 %v603, 48
        %v1037 = vpop.permute.xlu0 %1036
        %v1040 = vsel %vm614, %v1035, 0
        %1042 = vmatprep.subr.mxu0 0.0
        %1043 = vmatpush1.msra.mxu0 %v1037
        %1044 = vmatprep.subr.mxu0 0.0
        %1045 = vmatpush1.msra.mxu0 0.0
        %1046 = vmatprep.subr.mxu0 0.0
        %1047 = vmatpush1.msra.mxu0 0.0
        %1048 = vmatprep.subr.mxu0 0.0
        %1049 = vmatpush1.msra.mxu0 0.0
        %1050 = vmatprep.subr.mxu0 0.0
        %1051 = vmatpush1.msra.mxu0 0.0
        %1052 = vmatprep.subr.mxu0 0.0
        %1053 = vmatpush1.msra.mxu0 0.0
        %1054 = vmatprep.subr.mxu0 0.0
        %1055 = vmatpush1.msra.mxu0 0.0
        %1056 = vmatprep.subr.mxu0 0.0
        %1057 = vmatpush1.msra.mxu0 0.0
        %1058 = vmatprep.subr.mxu0 0.0
        %1059 = vmatpush1.msra.mxu0 0.0
        %1060 = vmatprep.subr.mxu0 0.0
        %1061 = vmatpush1.msra.mxu0 0.0
        %1062 = vmatprep.subr.mxu0 0.0
        %1063 = vmatpush1.msra.mxu0 0.0
        %1064 = vmatprep.subr.mxu0 0.0
        %1065 = vmatpush1.msra.mxu0 0.0
        %1066 = vmatprep.subr.mxu0 0.0
        %1067 = vmatpush1.msra.mxu0 0.0
        %1068 = vmatprep.subr.mxu0 0.0
        %1069 = vmatpush1.msra.mxu0 0.0
        %1070 = vmatprep.subr.mxu0 0.0
        %1071 = vmatpush1.msra.mxu0 0.0
        %1072 = vmatprep.subr.mxu0 0.0
        %1073 = vmatpush1.msra.mxu0 0.0
        %1074 = vmatprep.subr.mxu0 0.0
        %1075 = vmatpush1.msra.mxu0 0.0
        %1076 = vmatprep.subr.mxu0 0.0
        %1077 = vmatpush1.msra.mxu0 0.0
        %1078 = vmatprep.subr.mxu0 0.0
        %1079 = vmatpush1.msra.mxu0 0.0
        %1080 = vmatprep.subr.mxu0 0.0
        %1081 = vmatpush1.msra.mxu0 0.0
        %1082 = vmatprep.subr.mxu0 0.0
        %1083 = vmatpush1.msra.mxu0 0.0
        %1084 = vmatprep.subr.mxu0 0.0
        %1085 = vmatpush1.msra.mxu0 0.0
        %1086 = vmatprep.subr.mxu0 0.0
        %1087 = vmatpush1.msra.mxu0 0.0
        %1088 = vmatprep.subr.mxu0 0.0
        %1089 = vmatpush1.msra.mxu0 0.0
        %1090 = vmatprep.subr.mxu0 0.0
        %1091 = vmatpush1.msra.mxu0 0.0
        %1092 = vmatprep.subr.mxu0 0.0
        %1093 = vmatpush1.msra.mxu0 0.0
        %1094 = vmatprep.subr.mxu0 0.0
        %1095 = vmatpush1.msra.mxu0 0.0
        %1096 = vmatprep.subr.mxu0 0.0
        %1097 = vmatpush1.msra.mxu0 0.0
        %1098 = vmatprep.subr.mxu0 0.0
        %1099 = vmatpush1.msra.mxu0 0.0
        %1100 = vmatprep.subr.mxu0 0.0
        %1101 = vmatpush1.msra.mxu0 0.0
        %1102 = vmatprep.subr.mxu0 0.0
        %1103 = vmatpush1.msra.mxu0 0.0
        %1104 = vmatprep.subr.mxu0 0.0
        %1105 = vmatpush1.msra.mxu0 0.0
        %1106 = vmatprep.mubr.f32.mxu0 0.0
        %1107 = vmatmul.mubr.f32.gmra.mrb[0].mxu0 %v1040
        %v1108 = vpop.f32.mrb[0].mxu0
        %v1109 = vadd.f32 0.0, %v1108
        %v1110 = vpop.f32.mrb[0].mxu0
        %1111 = vdwg.mxu0
        %1112 = vrot.lane.b32.xlu0 %v603, 104
        %v1113 = vpop.permute.xlu0 %1112
        %1114 = vrot.lane.b32.xlu0 %v603, 72
        %v1115 = vpop.permute.xlu0 %1114
        %v1116 = vsel %vm614, %v1113, 0
        %v1118 = vsel %vm614, %v1115, 0
        %1120 = vmatprep.subr.mxu0 0.0
        %1121 = vmatpush1.xpose.msra.mxu0 %v1118
        %1122 = vmatprep.subr.mxu0 0.0
        %1123 = vmatpush1.xpose.msra.mxu0 0.0
        %1124 = vmatprep.subr.mxu0 0.0
        %1125 = vmatpush1.xpose.msra.mxu0 0.0
        %1126 = vmatprep.subr.mxu0 0.0
        %1127 = vmatpush1.xpose.msra.mxu0 0.0
        %1128 = vmatprep.subr.mxu0 0.0
        %1129 = vmatpush1.xpose.msra.mxu0 0.0
        %1130 = vmatprep.subr.mxu0 0.0
        %1131 = vmatpush1.xpose.msra.mxu0 0.0
        %1132 = vmatprep.subr.mxu0 0.0
        %1133 = vmatpush1.xpose.msra.mxu0 0.0
        %1134 = vmatprep.subr.mxu0 0.0
        %1135 = vmatpush1.xpose.msra.mxu0 0.0
        %1136 = vmatprep.subr.mxu0 0.0
        %1137 = vmatpush1.xpose.msra.mxu0 0.0
        %1138 = vmatprep.subr.mxu0 0.0
        %1139 = vmatpush1.xpose.msra.mxu0 0.0
        %1140 = vmatprep.subr.mxu0 0.0
        %1141 = vmatpush1.xpose.msra.mxu0 0.0
        %1142 = vmatprep.subr.mxu0 0.0
        %1143 = vmatpush1.xpose.msra.mxu0 0.0
        %1144 = vmatprep.subr.mxu0 0.0
        %1145 = vmatpush1.xpose.msra.mxu0 0.0
        %1146 = vmatprep.subr.mxu0 0.0
        %1147 = vmatpush1.xpose.msra.mxu0 0.0
        %1148 = vmatprep.subr.mxu0 0.0
        %1149 = vmatpush1.xpose.msra.mxu0 0.0
        %1150 = vmatprep.subr.mxu0 0.0
        %1151 = vmatpush1.xpose.msra.mxu0 0.0
        %1152 = vmatprep.subr.mxu0 0.0
        %1153 = vmatpush1.xpose.msra.mxu0 0.0
        %1154 = vmatprep.subr.mxu0 0.0
        %1155 = vmatpush1.xpose.msra.mxu0 0.0
        %1156 = vmatprep.subr.mxu0 0.0
        %1157 = vmatpush1.xpose.msra.mxu0 0.0
        %1158 = vmatprep.subr.mxu0 0.0
        %1159 = vmatpush1.xpose.msra.mxu0 0.0
        %1160 = vmatprep.subr.mxu0 0.0
        %1161 = vmatpush1.xpose.msra.mxu0 0.0
        %1162 = vmatprep.subr.mxu0 0.0
        %1163 = vmatpush1.xpose.msra.mxu0 0.0
        %1164 = vmatprep.subr.mxu0 0.0
        %1165 = vmatpush1.xpose.msra.mxu0 0.0
        %1166 = vmatprep.subr.mxu0 0.0
        %1167 = vmatpush1.xpose.msra.mxu0 0.0
        %1168 = vmatprep.subr.mxu0 0.0
        %1169 = vmatpush1.xpose.msra.mxu0 0.0
        %1170 = vmatprep.subr.mxu0 0.0
        %1171 = vmatpush1.xpose.msra.mxu0 0.0
        %1172 = vmatprep.subr.mxu0 0.0
        %1173 = vmatpush1.xpose.msra.mxu0 0.0
        %1174 = vmatprep.subr.mxu0 0.0
        %1175 = vmatpush1.xpose.msra.mxu0 0.0
        %1176 = vmatprep.subr.mxu0 0.0
        %1177 = vmatpush1.xpose.msra.mxu0 0.0
        %1178 = vmatprep.subr.mxu0 0.0
        %1179 = vmatpush1.xpose.msra.mxu0 0.0
        %1180 = vmatprep.subr.mxu0 0.0
        %1181 = vmatpush1.xpose.msra.mxu0 0.0
        %1182 = vmatprep.subr.mxu0 0.0
        %1183 = vmatpush1.xpose.msra.mxu0 0.0
        %1184 = vmatprep.mubr.f32.mxu0 0.0
        %1185 = vmatmul.mubr.f32.gmra.mrb[0].mxu0 %v1116
        %v1186 = vpop.f32.mrb[0].mxu0
        %v1187 = vadd.f32 0.0, %v1186
        %v1188 = vpop.f32.mrb[0].mxu0
        %1189 = vdwg.mxu0
        %v1190 = vmul.f32 %v1187, 0.35355338
        %v1191 = vsel %vm610, %v1190, -inf
        %v1192 = vsel %vm614, %v1191, -inf
        %1193 = vmax.xlane.f32.xlu0 %v1192
        %v1194 = vpop.xlane.xlu0 %1193
        %v1195 = vsub.f32 %v1191, %v1194
        %v1196 = vmul.f32 %v1195, 1.442695
        %v1197 = vpow.pop %v1196
        %v1198 = vsel %vm614, %v1197, 0.0
        %1199 = vadd.xlane.f32.xlu0 %v1198
        %v1200 = vpop.xlane.xlu0 %1199
        %v1201 = vrcp.pop %v1200
        %v1202 = vmul.f32 %v1197, %v1201
        %1203 = vrot.lane.b32.xlu0 %v603, 40
        %v1204 = vpop.permute.xlu0 %1203
        %v1207 = vsel %vm614, %v1202, 0
        %1209 = vmatprep.subr.mxu0 0.0
        %1210 = vmatpush1.msra.mxu0 %v1204
        %1211 = vmatprep.subr.mxu0 0.0
        %1212 = vmatpush1.msra.mxu0 0.0
        %1213 = vmatprep.subr.mxu0 0.0
        %1214 = vmatpush1.msra.mxu0 0.0
        %1215 = vmatprep.subr.mxu0 0.0
        %1216 = vmatpush1.msra.mxu0 0.0
        %1217 = vmatprep.subr.mxu0 0.0
        %1218 = vmatpush1.msra.mxu0 0.0
        %1219 = vmatprep.subr.mxu0 0.0
        %1220 = vmatpush1.msra.mxu0 0.0
        %1221 = vmatprep.subr.mxu0 0.0
        %1222 = vmatpush1.msra.mxu0 0.0
        %1223 = vmatprep.subr.mxu0 0.0
        %1224 = vmatpush1.msra.mxu0 0.0
        %1225 = vmatprep.subr.mxu0 0.0
        %1226 = vmatpush1.msra.mxu0 0.0
        %1227 = vmatprep.subr.mxu0 0.0
        %1228 = vmatpush1.msra.mxu0 0.0
        %1229 = vmatprep.subr.mxu0 0.0
        %1230 = vmatpush1.msra.mxu0 0.0
        %1231 = vmatprep.subr.mxu0 0.0
        %1232 = vmatpush1.msra.mxu0 0.0
        %1233 = vmatprep.subr.mxu0 0.0
        %1234 = vmatpush1.msra.mxu0 0.0
        %1235 = vmatprep.subr.mxu0 0.0
        %1236 = vmatpush1.msra.mxu0 0.0
        %1237 = vmatprep.subr.mxu0 0.0
        %1238 = vmatpush1.msra.mxu0 0.0
        %1239 = vmatprep.subr.mxu0 0.0
        %1240 = vmatpush1.msra.mxu0 0.0
        %1241 = vmatprep.subr.mxu0 0.0
        %1242 = vmatpush1.msra.mxu0 0.0
        %1243 = vmatprep.subr.mxu0 0.0
        %1244 = vmatpush1.msra.mxu0 0.0
        %1245 = vmatprep.subr.mxu0 0.0
        %1246 = vmatpush1.msra.mxu0 0.0
        %1247 = vmatprep.subr.mxu0 0.0
        %1248 = vmatpush1.msra.mxu0 0.0
        %1249 = vmatprep.subr.mxu0 0.0
        %1250 = vmatpush1.msra.mxu0 0.0
        %1251 = vmatprep.subr.mxu0 0.0
        %1252 = vmatpush1.msra.mxu0 0.0
        %1253 = vmatprep.subr.mxu0 0.0
        %1254 = vmatpush1.msra.mxu0 0.0
        %1255 = vmatprep.subr.mxu0 0.0
        %1256 = vmatpush1.msra.mxu0 0.0
        %1257 = vmatprep.subr.mxu0 0.0
        %1258 = vmatpush1.msra.mxu0 0.0
        %1259 = vmatprep.subr.mxu0 0.0
        %1260 = vmatpush1.msra.mxu0 0.0
        %1261 = vmatprep.subr.mxu0 0.0
        %1262 = vmatpush1.msra.mxu0 0.0
        %1263 = vmatprep.subr.mxu0 0.0
        %1264 = vmatpush1.msra.mxu0 0.0
        %1265 = vmatprep.subr.mxu0 0.0
        %1266 = vmatpush1.msra.mxu0 0.0
        %1267 = vmatprep.subr.mxu0 0.0
        %1268 = vmatpush1.msra.mxu0 0.0
        %1269 = vmatprep.subr.mxu0 0.0
        %1270 = vmatpush1.msra.mxu0 0.0
        %1271 = vmatprep.subr.mxu0 0.0
        %1272 = vmatpush1.msra.mxu0 0.0
        %1273 = vmatprep.mubr.f32.mxu0 0.0
        %1274 = vmatmul.mubr.f32.gmra.mrb[0].mxu0 %v1207
        %v1275 = vpop.f32.mrb[0].mxu0
        %v1276 = vadd.f32 0.0, %v1275
        %v1277 = vpop.f32.mrb[0].mxu0
        %1278 = vdwg.mxu0
        %1280 = vrot.lane.b32.xlu0 %v942, 8
        %v1281 = vpop.permute.xlu0 %1280
        %1284 = vrot.lane.b32.xlu0 %v1109, 16
        %v1285 = vpop.permute.xlu0 %1284
        %1288 = vrot.lane.b32.xlu0 %v1276, 24
        %v1289 = vpop.permute.xlu0 %1288
        %v1291 = vsel %vm614, %v775, %v1281
        %vm1292 = vcmask 130048
        %v1293 = vsel %vm1292, %v1291, %v1285
        %vm1294 = vcmask 195584
        %v1295 = vsel %vm1294, %v1293, %v1289
        %v1296 = vld [vmem:[%s5] sm:$0xff]
        %v1297 = vld [vmem:[%s5 + $0x8] sm:$0xff]
        %v1298 = vld [vmem:[%s5 + $0x10] sm:$0xff]
        %v1299 = vld [vmem:[%s5 + $0x18] sm:$0xff]
        %v1300 = vld [vmem:[%s6] sm:$0x1]
        %v1302 = vlaneseq
        %v1303 = vshrl.u32 %v1302, 7
        %v1304 = vsub.s32 0, %v1303
        %v1305 = vrot.slane %v1300, %v1304
        %v1308 = vsel %vm491, %v1295, 0
        %1310 = vmatprep.subr.mxu0 0.0
        %1311 = vmatpush1.msra.mxu0 %v1296
        %1312 = vmatprep.subr.mxu0 0.0
        %1313 = vmatpush1.msra.mxu0 %v1297
        %1314 = vmatprep.subr.mxu0 0.0
        %1315 = vmatpush1.msra.mxu0 %v1298
        %1316 = vmatprep.subr.mxu0 0.0
        %1317 = vmatpush1.msra.mxu0 %v1299
        %1318 = vmatprep.subr.mxu0 0.0
        %1319 = vmatpush1.msra.mxu0 0.0
        %1320 = vmatprep.subr.mxu0 0.0
        %1321 = vmatpush1.msra.mxu0 0.0
        %1322 = vmatprep.subr.mxu0 0.0
        %1323 = vmatpush1.msra.mxu0 0.0
        %1324 = vmatprep.subr.mxu0 0.0
        %1325 = vmatpush1.msra.mxu0 0.0
        %1326 = vmatprep.subr.mxu0 0.0
        %1327 = vmatpush1.msra.mxu0 0.0
        %1328 = vmatprep.subr.mxu0 0.0
        %1329 = vmatpush1.msra.mxu0 0.0
        %1330 = vmatprep.subr.mxu0 0.0
        %1331 = vmatpush1.msra.mxu0 0.0
        %1332 = vmatprep.subr.mxu0 0.0
        %1333 = vmatpush1.msra.mxu0 0.0
        %1334 = vmatprep.subr.mxu0 0.0
        %1335 = vmatpush1.msra.mxu0 0.0
        %1336 = vmatprep.subr.mxu0 0.0
        %1337 = vmatpush1.msra.mxu0 0.0
        %1338 = vmatprep.subr.mxu0 0.0
        %1339 = vmatpush1.msra.mxu0 0.0
        %1340 = vmatprep.subr.mxu0 0.0
        %1341 = vmatpush1.msra.mxu0 0.0
        %1342 = vmatprep.subr.mxu0 0.0
        %1343 = vmatpush1.msra.mxu0 0.0
        %1344 = vmatprep.subr.mxu0 0.0
        %1345 = vmatpush1.msra.mxu0 0.0
        %1346 = vmatprep.subr.mxu0 0.0
        %1347 = vmatpush1.msra.mxu0 0.0
        %1348 = vmatprep.subr.mxu0 0.0
        %1349 = vmatpush1.msra.mxu0 0.0
        %1350 = vmatprep.subr.mxu0 0.0
        %1351 = vmatpush1.msra.mxu0 0.0
        %1352 = vmatprep.subr.mxu0 0.0
        %1353 = vmatpush1.msra.mxu0 0.0
        %1354 = vmatprep.subr.mxu0 0.0
        %1355 = vmatpush1.msra.mxu0 0.0
        %1356 = vmatprep.subr.mxu0 0.0
        %1357 = vmatpush1.msra.mxu0 0.0
        %1358 = vmatprep.subr.mxu0 0.0
        %1359 = vmatpush1.msra.mxu0 0.0
        %1360 = vmatprep.subr.mxu0 0.0
        %1361 = vmatpush1.msra.mxu0 0.0
        %1362 = vmatprep.subr.mxu0 0.0
        %1363 = vmatpush1.msra.mxu0 0.0
        %1364 = vmatprep.subr.mxu0 0.0
        %1365 = vmatpush1.msra.mxu0 0.0
        %1366 = vmatprep.subr.mxu0 0.0
        %1367 = vmatpush1.msra.mxu0 0.0
        %1368 = vmatprep.subr.mxu0 0.0
        %1369 = vmatpush1.msra.mxu0 0.0
        %1370 = vmatprep.subr.mxu0 0.0
        %1371 = vmatpush1.msra.mxu0 0.0
        %1372 = vmatprep.subr.mxu0 0.0
        %1373 = vmatpush1.msra.mxu0 0.0
        %1374 = vmatprep.mubr.f32.mxu0 0.0
        %1375 = vmatmul.mubr.f32.gmra.mrb[0].mxu0 %v1308
        %v1376 = vpop.f32.mrb[0].mxu0
        %v1377 = vadd.f32 %v1305, %v1376
        %v1378 = vpop.f32.mrb[0].mxu0
        %1379 = vdwg.mxu0
        %v1380 = vadd.f32 %v490, %v1377
        %v1381 = vsel %vm491, %v1380, 0.0
        %1382 = vadd.xlane.f32.xlu0 %v1381
        %v1383 = vpop.xlane.xlu0 %1382
        %v1384 = vmul.f32 %v1383, %v495
        %v1385 = vsub.f32 %v1380, %v1384
        %v1386 = vmul.f32 %v1385, %v1385
        %v1387 = vsel %vm491, %v1386, 0.0
        %1388 = vadd.xlane.f32.xlu0 %v1387
        %v1389 = vpop.xlane.xlu0 %1388
        %v1390 = vmul.f32 %v1389, %v495
        %v1391 = vadd.f32 %v1390, 1e-05
        %v1392 = vrsqrt.pop %v1391
        %v1393 = vmul.f32 %v1385, %v1392
        %v1394 = vld [vmem:[%s7] sm:$0x1]
        %v1396 = vlaneseq
        %v1397 = vshrl.u32 %v1396, 7
        %v1398 = vsub.s32 0, %v1397
        %v1399 = vrot.slane %v1394, %v1398
        %v1401 = vmul.f32 %v1393, %v1399
        %v1402 = vld [vmem:[%s8] sm:$0x1]
        %v1404 = vlaneseq
        %v1405 = vshrl.u32 %v1404, 7
        %v1406 = vsub.s32 0, %v1405
        %v1407 = vrot.slane %v1402, %v1406
        %v1409 = vadd.f32 %v1401, %v1407
        %v1410 = vld [vmem:[%s9] sm:$0xff]
        %v1411 = vld [vmem:[%s9 + $0x8] sm:$0xff]
        %v1412 = vld [vmem:[%s9 + $0x10] sm:$0xff]
        %v1413 = vld [vmem:[%s9 + $0x18] sm:$0xff]
        %v1414 = vld [vmem:[%s10] sm:$0x1]
        %v1416 = vlaneseq
        %v1417 = vshrl.u32 %v1416, 7
        %v1418 = vsub.s32 0, %v1417
        %v1419 = vrot.slane %v1414, %v1418
        %v1422 = vsel %vm491, %v1409, 0
        %1424 = vmatprep.subr.mxu0 0.0
        %1425 = vmatpush1.msra.mxu0 %v1410
        %1426 = vmatprep.subr.mxu0 0.0
        %1427 = vmatpush1.msra.mxu0 %v1411
        %1428 = vmatprep.subr.mxu0 0.0
        %1429 = vmatpush1.msra.mxu0 %v1412
        %1430 = vmatprep.subr.mxu0 0.0
        %1431 = vmatpush1.msra.mxu0 %v1413
        %1432 = vmatprep.subr.mxu0 0.0
        %1433 = vmatpush1.msra.mxu0 0.0
        %1434 = vmatprep.subr.mxu0 0.0
        %1435 = vmatpush1.msra.mxu0 0.0
        %1436 = vmatprep.subr.mxu0 0.0
        %1437 = vmatpush1.msra.mxu0 0.0
        %1438 = vmatprep.subr.mxu0 0.0
        %1439 = vmatpush1.msra.mxu0 0.0
        %1440 = vmatprep.subr.mxu0 0.0
        %1441 = vmatpush1.msra.mxu0 0.0
        %1442 = vmatprep.subr.mxu0 0.0
        %1443 = vmatpush1.msra.mxu0 0.0
        %1444 = vmatprep.subr.mxu0 0.0
        %1445 = vmatpush1.msra.mxu0 0.0
        %1446 = vmatprep.subr.mxu0 0.0
        %1447 = vmatpush1.msra.mxu0 0.0
        %1448 = vmatprep.subr.mxu0 0.0
        %1449 = vmatpush1.msra.mxu0 0.0
        %1450 = vmatprep.subr.mxu0 0.0
        %1451 = vmatpush1.msra.mxu0 0.0
        %1452 = vmatprep.subr.mxu0 0.0
        %1453 = vmatpush1.msra.mxu0 0.0
        %1454 = vmatprep.subr.mxu0 0.0
        %1455 = vmatpush1.msra.mxu0 0.0
        %1456 = vmatprep.subr.mxu0 0.0
        %1457 = vmatpush1.msra.mxu0 0.0
        %1458 = vmatprep.subr.mxu0 0.0
        %1459 = vmatpush1.msra.mxu0 0.0
        %1460 = vmatprep.subr.mxu0 0.0
        %1461 = vmatpush1.msra.mxu0 0.0
        %1462 = vmatprep.subr.mxu0 0.0
        %1463 = vmatpush1.msra.mxu0 0.0
        %1464 = vmatprep.subr.mxu0 0.0
        %1465 = vmatpush1.msra.mxu0 0.0
        %1466 = vmatprep.subr.mxu0 0.0
        %1467 = vmatpush1.msra.mxu0 0.0
        %1468 = vmatprep.subr.mxu0 0.0
        %1469 = vmatpush1.msra.mxu0 0.0
        %1470 = vmatprep.subr.mxu0 0.0
        %1471 = vmatpush1.msra.mxu0 0.0
        %1472 = vmatprep.subr.mxu0 0.0
        %1473 = vmatpush1.msra.mxu0 0.0
        %1474 = vmatprep.subr.mxu0 0.0
        %1475 = vmatpush1.msra.mxu0 0.0
        %1476 = vmatprep.subr.mxu0 0.0
        %1477 = vmatpush1.msra.mxu0 0.0
        %1478 = vmatprep.subr.mxu0 0.0
        %1479 = vmatpush1.msra.mxu0 0.0
        %1480 = vmatprep.subr.mxu0 0.0
        %1481 = vmatpush1.msra.mxu0 0.0
        %1482 = vmatprep.subr.mxu0 0.0
        %1483 = vmatpush1.msra.mxu0 0.0
        %1484 = vmatprep.subr.mxu0 0.0
        %1485 = vmatpush1.msra.mxu0 0.0
        %1486 = vmatprep.subr.mxu0 0.0
        %1487 = vmatpush1.msra.mxu0 0.0
        %1488 = vmatprep.mubr.f32.mxu0 0.0
        %1489 = vmatmul.mubr.f32.gmra.mrb[0].mxu0 %v1422
        %v1490 = vpop.f32.mrb[0].mxu0
        %v1491 = vadd.f32 %v1419, %v1490
        %v1492 = vpop.f32.mrb[0].mxu0
        %1493 = vdwg.mxu0
        %1494 = vadd.xlane.f32.xlu0 %v1491
        %v1495 = vpop.xlane.xlu0 %1494
        %v1496 = vrcp.pop 128.0
        %v1497 = vmul.f32 %v1495, %v1496
        %v1498 = vsub.f32 %v1491, %v1497
        %v1499 = vmul.f32 %v1498, %v1498
        %1500 = vadd.xlane.f32.xlu0 %v1499
        %v1501 = vpop.xlane.xlu0 %1500
        %v1502 = vmul.f32 %v1501, %v1496
        %v1503 = vadd.f32 %v1502, 1e-05
        %v1504 = vrsqrt.pop %v1503
        %v1505 = vmul.f32 %v1498, %v1504
        %v1506 = vld [vmem:[%s11] sm:$0x1]
        %v1508 = vlaneseq
        %v1509 = vshrl.u32 %v1508, 7
        %v1510 = vsub.s32 0, %v1509
        %v1511 = vrot.slane %v1506, %v1510
        %v1513 = vmul.f32 %v1505, %v1511
        %v1514 = vld [vmem:[%s12] sm:$0x1]
        %v1516 = vlaneseq
        %v1517 = vshrl.u32 %v1516, 7
        %v1518 = vsub.s32 0, %v1517
        %v1519 = vrot.slane %v1514, %v1518
        %v1521 = vadd.f32 %v1513, %v1519
        %v1522 = vmul.f32 %v1521, 0.5
        %v1523 = vmul.f32 %v1521, 0.70710677
        %v1524 = verf.f32.pop %v1523
        %v1525 = vadd.f32 %v1524, 1.0
        %v1526 = vmul.f32 %v1522, %v1525
        %v1527 = vld [vmem:[%s13] sm:$0xff]
        %v1528 = vld [vmem:[%s13 + $0x8] sm:$0xff]
        %v1529 = vld [vmem:[%s13 + $0x10] sm:$0xff]
        %v1530 = vld [vmem:[%s13 + $0x18] sm:$0xff]
        %v1531 = vld [vmem:[%s13 + $0x20] sm:$0xff]
        %v1532 = vld [vmem:[%s13 + $0x28] sm:$0xff]
        %v1533 = vld [vmem:[%s13 + $0x30] sm:$0xff]
        %v1534 = vld [vmem:[%s13 + $0x38] sm:$0xff]
        %v1535 = vld [vmem:[%s13 + $0x40] sm:$0xff]
        %v1536 = vld [vmem:[%s13 + $0x48] sm:$0xff]
        %v1537 = vld [vmem:[%s13 + $0x50] sm:$0xff]
        %v1538 = vld [vmem:[%s13 + $0x58] sm:$0xff]
        %v1539 = vld [vmem:[%s13 + $0x60] sm:$0xff]
        %v1540 = vld [vmem:[%s13 + $0x68] sm:$0xff]
        %v1541 = vld [vmem:[%s13 + $0x70] sm:$0xff]
        %v1542 = vld [vmem:[%s13 + $0x78] sm:$0xff]
        %v1543 = vld [vmem:[%s14] sm:$0x1]
        %v1545 = vlaneseq
        %v1546 = vshrl.u32 %v1545, 7
        %v1547 = vsub.s32 0, %v1546
        %v1548 = vrot.slane %v1543, %v1547
        %1550 = vmatprep.subr.mxu0 0.0
        %1551 = vmatpush1.msra.mxu0 %v1527
        %1552 = vmatprep.subr.mxu0 0.0
        %1553 = vmatpush1.msra.mxu0 %v1528
        %1554 = vmatprep.subr.mxu0 0.0
        %1555 = vmatpush1.msra.mxu0 %v1529
        %1556 = vmatprep.subr.mxu0 0.0
        %1557 = vmatpush1.msra.mxu0 %v1530
        %1558 = vmatprep.subr.mxu0 0.0
        %1559 = vmatpush1.msra.mxu0 %v1531
        %1560 = vmatprep.subr.mxu0 0.0
        %1561 = vmatpush1.msra.mxu0 %v1532
        %1562 = vmatprep.subr.mxu0 0.0
        %1563 = vmatpush1.msra.mxu0 %v1533
        %1564 = vmatprep.subr.mxu0 0.0
        %1565 = vmatpush1.msra.mxu0 %v1534
        %1566 = vmatprep.subr.mxu0 0.0
        %1567 = vmatpush1.msra.mxu0 %v1535
        %1568 = vmatprep.subr.mxu0 0.0
        %1569 = vmatpush1.msra.mxu0 %v1536
        %1570 = vmatprep.subr.mxu0 0.0
        %1571 = vmatpush1.msra.mxu0 %v1537
        %1572 = vmatprep.subr.mxu0 0.0
        %1573 = vmatpush1.msra.mxu0 %v1538
        %1574 = vmatprep.subr.mxu0 0.0
        %1575 = vmatpush1.msra.mxu0 %v1539
        %1576 = vmatprep.subr.mxu0 0.0
        %1577 = vmatpush1.msra.mxu0 %v1540
        %1578 = vmatprep.subr.mxu0 0.0
        %1579 = vmatpush1.msra.mxu0 %v1541
        %1580 = vmatprep.subr.mxu0 0.0
        %1581 = vmatpush1.msra.mxu0 %v1542
        %1582 = vmatprep.subr.mxu0 0.0
        %1583 = vmatpush1.msra.mxu0 0.0
        %1584 = vmatprep.subr.mxu0 0.0
        %1585 = vmatpush1.msra.mxu0 0.0
        %1586 = vmatprep.subr.mxu0 0.0
        %1587 = vmatpush1.msra.mxu0 0.0
        %1588 = vmatprep.subr.mxu0 0.0
        %1589 = vmatpush1.msra.mxu0 0.0
        %1590 = vmatprep.subr.mxu0 0.0
        %1591 = vmatpush1.msra.mxu0 0.0
        %1592 = vmatprep.subr.mxu0 0.0
        %1593 = vmatpush1.msra.mxu0 0.0
        %1594 = vmatprep.subr.mxu0 0.0
        %1595 = vmatpush1.msra.mxu0 0.0
        %1596 = vmatprep.subr.mxu0 0.0
        %1597 = vmatpush1.msra.mxu0 0.0
        %1598 = vmatprep.subr.mxu0 0.0
        %1599 = vmatpush1.msra.mxu0 0.0
        %1600 = vmatprep.subr.mxu0 0.0
        %1601 = vmatpush1.msra.mxu0 0.0
        %1602 = vmatprep.subr.mxu0 0.0
        %1603 = vmatpush1.msra.mxu0 0.0
        %1604 = vmatprep.subr.mxu0 0.0
        %1605 = vmatpush1.msra.mxu0 0.0
        %1606 = vmatprep.subr.mxu0 0.0
        %1607 = vmatpush1.msra.mxu0 0.0
        %1608 = vmatprep.subr.mxu0 0.0
        %1609 = vmatpush1.msra.mxu0 0.0
        %1610 = vmatprep.subr.mxu0 0.0
        %1611 = vmatpush1.msra.mxu0 0.0
        %1612 = vmatprep.subr.mxu0 0.0
        %1613 = vmatpush1.msra.mxu0 0.0
        %1614 = vmatprep.mubr.f32.mxu0 0.0
        %1615 = vmatmul.mubr.f32.gmra.mrb[0].mxu0 %v1526
        %v1616 = vpop.f32.mrb[0].mxu0
        %v1617 = vadd.f32 %v1548, %v1616
        %v1618 = vpop.f32.mrb[0].mxu0
        %1619 = vdwg.mxu0
        %v1620 = vadd.f32 %v1380, %v1617
        %1621 = vst.msk [vmem:[%s485] sm:$0xff] %vm491, %v1620
        %s1622 = sand.u32 %s357, 1
        %s1623 = scalar_lea.sflag [#allocation3], %s1622
        %s1624 = sand.u32 %s357, 1
        %s1625 = smul.addr %s1624, 8
        %s1626 = scalar_lea.vmem [#allocation2], %s1625
        // Predicated region
        $region81: #{tpu_custom_call.1} parent=79 // pred_check
          %p1627 = pneg %p367
        $region82: #{tpu_custom_call.1} parent=79 // pred_check_branch
          %1629 = sbr.rel (%p1627) target = $region84
        $region83: #{tpu_custom_call.1} parent=79 // pred_region
          %s1631 = ssub.s32 128, 128
          %1632 = vsyncadd %s1623, %s1631
          %s1633 = smul.addr %s29, 128
          %s1634 = scalar_lea.hbm %s15, %s1633
          %s1636 = sshll.u32 %s1626, 4
          %s1637 = int_to_ptr.vmem [resolvable:$true] %s1636
          %1639 = dma.vmem_to_hbm [thread:$0]  %s1637, 128, %s1634, %s1623
        $region84: #{tpu_custom_call.1} parent=79 // pred_fallthru
          _
      $region80: #{tpu_custom_call.1} parent=5 // pred_fallthru
        _
      %p1640 = scmp.le.s32.totalorder 2, %s24
      // Predicated region
      $region85: #{tpu_custom_call.1} parent=5 // pred_check
        %p1641 = pneg %p1640
      $region86: #{tpu_custom_call.1} parent=5 // pred_check_branch
        %1643 = sbr.rel (%p1641) target = $region88
      $region87: #{tpu_custom_call.1} parent=5 // pred_region
        %s1644 = ssub.s32 %s24, 2
        // Predicated region
        $region89: #{tpu_custom_call.1} parent=87 // pred_check
          %p1645 = pneg %p373
        $region90: #{tpu_custom_call.1} parent=87 // pred_check_branch
          %1647 = sbr.rel (%p1645) target = $region92
        $region91: #{tpu_custom_call.1} parent=87 // pred_region
          %s1648 = sand.u32 %s358, 1
          %s1649 = scalar_lea.sflag [#allocation3], %s1648
          %s1650 = sand.u32 %s358, 1
          %s1651 = smul.addr %s1650, 8
          %s1652 = scalar_lea.vmem [#allocation2], %s1651
          %1653 = dma.done %s1649, 128
        $region92: #{tpu_custom_call.1} parent=87 // pred_fallthru
          _
      $region88: #{tpu_custom_call.1} parent=5 // pred_fallthru
        _
    $region6: #{tpu_custom_call.1} parent=1 // loop_footer
      %s28 = sadd.s32 1, %s24
    $region7: #{tpu_custom_call.1} parent=1 // loop_footer_branch
      %23 = sbr.rel target = $region3
    $region8: #{tpu_custom_call.1} parent=1 // loop_exit
      _
    %1654 = vsyncpa [#allocation3], 1
    %s1655 = scalar_lea.sflag [#allocation3], 1
    %1656 = vsyncpa %s1655, 1

</llo_original>
